<compile_context>
chip_gen: v7x
topology: tpu7x:2x2x1
jax: 0.10.0
libtpu: 0.0.40
codegen_flags: <defaults>
</compile_context>

<pallas_src>
import numpy as np
import jax
import jax.numpy as jnp
from jax import lax
from jax.experimental import pallas as pl
from jax.experimental.pallas import tpu as pltpu

# Static net geometry implied by Linear(16*4*4, 2): 11x11 input.
C_IN, H_IN, W_IN = 3, 11, 11
OC, KH, KW = 16, 3, 3
OH, OW = H_IN - KH + 1, W_IN - KW + 1                 # 9, 9
PK, PS = 3, 2                                          # maxpool kernel / stride
PH, PW = (OH - PK) // PS + 1, (OW - PK) // PS + 1      # 4, 4
CHW = C_IN * H_IN * W_IN                               # 363
NPOOL = OC * PH * PW                                   # 256
NTAP = PK * PK                                         # 9
NOUT = 2
NW = NTAP * NPOOL                                      # 2304


def fused_net_kernel(x_ref, w9_ref, aux_ref, o_ref):
    # x:(TB,363) f32   w9:(363,2304) bf16   aux:(4,256) f32   o:(TB,2) f32
    x = x_ref[...].astype(jnp.bfloat16)
    # Conv + pool-window gather as ONE bf16 MXU pass; columns [t*256:(t+1)*256] of the
    # result hold the t-th 3x3-pool tap for every (channel, pooled-position).
    m_all = jnp.dot(x, w9_ref[...], preferred_element_type=jnp.float32)   # (TB, 2304)
    # Max-pool: running maximum over 9 lane-aligned 256-wide slabs (whole vregs, VPU only).
    m = m_all[:, 0:NPOOL]
    for t in range(1, NTAP):
        m = jnp.maximum(m, m_all[:, t * NPOOL:(t + 1) * NPOOL])

    aux = aux_ref[...]                                  # (4, 256) f32
    act = jnp.maximum(m + aux[0][None, :], 0.0)         # conv bias + ReLU, (TB, 256)

    # Linear(256,2) on the VPU/XLU: two full-density (TB,256) mul + lane reductions
    # (avoids a masked N=2 MXU pass and any (TB,2,256) sublane-sparse intermediate).
    o0 = jnp.sum(act * aux[1][None, :], axis=-1, keepdims=True)   # (TB, 1)
    o1 = jnp.sum(act * aux[2][None, :], axis=-1, keepdims=True)   # (TB, 1)
    lb = aux[3, 0:NOUT]                                           # (2,)
    o_ref[...] = jnp.concatenate([o0, o1], axis=-1) + lb[None, :]


def prepare_params(conv_w, conv_b, lin_w, lin_b):
    """One-time parameter lowering; hoisted out of the per-call path."""
    cw = np.asarray(conv_w, dtype=np.float32)          # (16, 3, 3, 3)
    cb = np.asarray(conv_b, dtype=np.float32)          # (16,)
    w9 = np.zeros((NTAP, CHW, NPOOL), dtype=np.float32)
    for dh in range(PK):
        for dw in range(PK):
            t = dh * PK + dw
            for oc in range(OC):
                for i in range(PH):
                    for j in range(PW):
                        p = (oc * PH + i) * PW + j      # torch flatten order c*16+i*4+j
                        oh, ow = PS * i + dh, PS * j + dw
                        for c in range(C_IN):
                            for kh in range(KH):
                                for kw in range(KW):
                                    q = (c * H_IN + oh + kh) * W_IN + (ow + kw)
                                    w9[t, q, p] = cw[oc, c, kh, kw]
    # 2-D lane-dense layout: column block t*256..(t+1)*256 is tap t.
    w9_2d = np.transpose(w9, (1, 0, 2)).reshape(CHW, NW)          # (363, 2304)

    # Pack all tiny params into one (4, 256) slab: [pooled conv bias, lw0, lw1, lb|0...].
    aux = np.zeros((4, NPOOL), dtype=np.float32)
    aux[0] = np.repeat(cb, PH * PW)                               # conv bias per pooled pos
    lw = np.asarray(lin_w, dtype=np.float32)                      # (2, 256)
    aux[1] = lw[0]
    aux[2] = lw[1]
    aux[3, :NOUT] = np.asarray(lin_b, dtype=np.float32)
    return (jnp.asarray(w9_2d, dtype=jnp.bfloat16), jnp.asarray(aux))


def net_forward(x, prepared):
    w9, aux = prepared
    B = x.shape[0]
    x_flat = x.reshape(B, CHW)              # contiguous NCHW flatten: layout no-op
    # Cap the row tile at 128: keeps the 9-tap max accumulator vreg-resident and gives
    # >=2 grid steps (v7x: both TensorCores) once B >= 256.  At B=2 the grid is (1,).
    TB = B if B <= 128 else 128
    grid = (pl.cdiv(B, TB),)
    return pl.pallas_call(
        fused_net_kernel,
        out_shape=jax.ShapeDtypeStruct((B, NOUT), jnp.float32),
        grid=grid,
        in_specs=[
            pl.BlockSpec((TB, CHW), lambda b: (b, 0)),
            pl.BlockSpec((CHW, NW), lambda b: (0, 0)),     # weights stay VMEM-resident
            pl.BlockSpec((4, NPOOL), lambda b: (0, 0)),
        ],
        out_specs=pl.BlockSpec((TB, NOUT), lambda b: (b, 0)),
        compiler_params=pltpu.CompilerParams(dimension_semantics=("parallel",)),
    )(x_flat, w9, aux)


if __name__ == "__main__":
    key = jax.random.PRNGKey(0)
    k1, k2, k3, k4, k5 = jax.random.split(key, 5)

    # Smallest shape consistent with the module: 11x11 input ->
    # conv(3) -> 9x9 -> maxpool(3,2) -> 4x4 -> flatten 16*4*4=256 -> Linear(256,2)
    B = 2
    x = jax.random.normal(k1, (B, C_IN, H_IN, W_IN), dtype=jnp.float32)

    conv_w = jax.random.normal(k2, (OC, C_IN, KH, KW), dtype=jnp.float32) * 0.1
    conv_b = jax.random.normal(k3, (OC,), dtype=jnp.float32) * 0.1
    lin_w = jax.random.normal(k4, (NOUT, NPOOL), dtype=jnp.float32) * 0.1
    lin_b = jax.random.normal(k5, (NOUT,), dtype=jnp.float32) * 0.1

    prepared = prepare_params(conv_w, conv_b, lin_w, lin_b)   # once, off the hot path

    out = jax.jit(net_forward)(x, prepared)
    out = jax.block_until_ready(out)

    # Pure-JAX f32 reference for sanity (kernel weights are bf16 -> relaxed tolerance).
    ref_conv = lax.conv_general_dilated(
        x, conv_w, (1, 1), "VALID", dimension_numbers=("NCHW", "OIHW", "NCHW")
    ) + conv_b.reshape(1, OC, 1, 1)
    ref_pool = lax.reduce_window(
        ref_conv, -jnp.inf, lax.max, (1, 1, PK, PK), (1, 1, PS, PS), "VALID"
    )
    ref_act = jnp.maximum(ref_pool, 0.0).reshape(B, -1)
    ref_out = ref_act @ lin_w.T + lin_b

    assert out.shape == (B, NOUT)
    assert jnp.allclose(out, ref_out, atol=5e-2, rtol=5e-2), (out, ref_out)
    print("KERNEL_OK")
</pallas_src>

<mosaic_0001>
module attributes {stable_mosaic.version = 11 : i64} {
  func.func @fused_net_kernel(%arg0: i32, %arg1: memref<2x363xf32, #tpu.memory_space<vmem>>, %arg2: memref<363x2304xbf16, #tpu.memory_space<vmem>>, %arg3: memref<4x256xf32, #tpu.memory_space<vmem>>, %arg4: memref<2x2xf32, #tpu.memory_space<vmem>>) attributes {dimension_semantics = [#tpu.dimension_semantics<parallel>], iteration_bounds = array<i64: 1>, scalar_prefetch = 0 : i64, scratch_operands = 0 : i64, tpu.core_type = #tpu.core_type<tc>, window_params = [{transform_indices = @transform_0, window_bounds = array<i64: 2, 363>}, {pipeline_mode = #tpu.pipeline_mode<synchronous>, transform_indices = @transform_1, window_bounds = array<i64: 363, 2304>}, {pipeline_mode = #tpu.pipeline_mode<synchronous>, transform_indices = @transform_2, window_bounds = array<i64: 4, 256>}, {transform_indices = @transform_3, window_bounds = array<i64: 2, 2>}]} {
    %c0 = arith.constant 0 : index
    %c0_0 = arith.constant 0 : index
    %0 = vector.load %arg1[%c0, %c0_0] : memref<2x363xf32, #tpu.memory_space<vmem>>, vector<2x363xf32>
    %1 = arith.truncf %0 : vector<2x363xf32> to vector<2x363xbf16>
    %c0_1 = arith.constant 0 : index
    %c0_2 = arith.constant 0 : index
    %2 = vector.load %arg2[%c0_1, %c0_2] : memref<363x2304xbf16, #tpu.memory_space<vmem>>, vector<363x2304xbf16>
    %cst = arith.constant dense<0.000000e+00> : vector<2x2304xf32>
    %3 = tpu.matmul %1, %2, %cst {dimension_numbers = #tpu.dot_dimension_numbers<[1], [0], [0], [1], [0, 0, 1, 1], [], []>} : vector<2x363xbf16>, vector<363x2304xbf16>, vector<2x2304xf32> -> vector<2x2304xf32>
    %4 = vector.extract_strided_slice %3 {offsets = [0, 0], sizes = [2, 256], strides = [1, 1]} : vector<2x2304xf32> to vector<2x256xf32>
    %5 = vector.extract_strided_slice %3 {offsets = [0, 256], sizes = [2, 256], strides = [1, 1]} : vector<2x2304xf32> to vector<2x256xf32>
    %6 = arith.maximumf %4, %5 : vector<2x256xf32>
    %7 = vector.extract_strided_slice %3 {offsets = [0, 512], sizes = [2, 256], strides = [1, 1]} : vector<2x2304xf32> to vector<2x256xf32>
    %8 = arith.maximumf %6, %7 : vector<2x256xf32>
    %9 = vector.extract_strided_slice %3 {offsets = [0, 768], sizes = [2, 256], strides = [1, 1]} : vector<2x2304xf32> to vector<2x256xf32>
    %10 = arith.maximumf %8, %9 : vector<2x256xf32>
    %11 = vector.extract_strided_slice %3 {offsets = [0, 1024], sizes = [2, 256], strides = [1, 1]} : vector<2x2304xf32> to vector<2x256xf32>
    %12 = arith.maximumf %10, %11 : vector<2x256xf32>
    %13 = vector.extract_strided_slice %3 {offsets = [0, 1280], sizes = [2, 256], strides = [1, 1]} : vector<2x2304xf32> to vector<2x256xf32>
    %14 = arith.maximumf %12, %13 : vector<2x256xf32>
    %15 = vector.extract_strided_slice %3 {offsets = [0, 1536], sizes = [2, 256], strides = [1, 1]} : vector<2x2304xf32> to vector<2x256xf32>
    %16 = arith.maximumf %14, %15 : vector<2x256xf32>
    %17 = vector.extract_strided_slice %3 {offsets = [0, 1792], sizes = [2, 256], strides = [1, 1]} : vector<2x2304xf32> to vector<2x256xf32>
    %18 = arith.maximumf %16, %17 : vector<2x256xf32>
    %19 = vector.extract_strided_slice %3 {offsets = [0, 2048], sizes = [2, 256], strides = [1, 1]} : vector<2x2304xf32> to vector<2x256xf32>
    %20 = arith.maximumf %18, %19 : vector<2x256xf32>
    %c0_3 = arith.constant 0 : index
    %c0_4 = arith.constant 0 : index
    %21 = vector.load %arg3[%c0_3, %c0_4] : memref<4x256xf32, #tpu.memory_space<vmem>>, vector<4x256xf32>
    %22 = vector.extract_strided_slice %21 {offsets = [0, 0], sizes = [1, 256], strides = [1, 1]} : vector<4x256xf32> to vector<1x256xf32>
    %23 = vector.shape_cast %22 : vector<1x256xf32> to vector<256xf32>
    %24 = vector.shape_cast %23 : vector<256xf32> to vector<1x256xf32>
    %25 = vector.broadcast %24 : vector<1x256xf32> to vector<2x256xf32>
    %26 = arith.addf %20, %25 : vector<2x256xf32>
    %cst_5 = arith.constant 0.000000e+00 : f32
    %27 = vector.broadcast %cst_5 : f32 to vector<2x256xf32>
    %28 = arith.maximumf %26, %27 : vector<2x256xf32>
    %29 = vector.extract_strided_slice %21 {offsets = [1, 0], sizes = [1, 256], strides = [1, 1]} : vector<4x256xf32> to vector<1x256xf32>
    %30 = vector.shape_cast %29 : vector<1x256xf32> to vector<256xf32>
    %31 = vector.shape_cast %30 : vector<256xf32> to vector<1x256xf32>
    %32 = vector.broadcast %31 : vector<1x256xf32> to vector<2x256xf32>
    %33 = arith.mulf %28, %32 : vector<2x256xf32>
    %cst_6 = arith.constant dense<0.000000e+00> : vector<2xf32>
    %34 = vector.multi_reduction <add>, %33, %cst_6 [1] : vector<2x256xf32> to vector<2xf32>
    %35 = vector.shape_cast %34 : vector<2xf32> to vector<2x1xf32>
    %36 = vector.extract_strided_slice %21 {offsets = [2, 0], sizes = [1, 256], strides = [1, 1]} : vector<4x256xf32> to vector<1x256xf32>
    %37 = vector.shape_cast %36 : vector<1x256xf32> to vector<256xf32>
    %38 = vector.shape_cast %37 : vector<256xf32> to vector<1x256xf32>
    %39 = vector.broadcast %38 : vector<1x256xf32> to vector<2x256xf32>
    %40 = arith.mulf %28, %39 : vector<2x256xf32>
    %cst_7 = arith.constant dense<0.000000e+00> : vector<2xf32>
    %41 = vector.multi_reduction <add>, %40, %cst_7 [1] : vector<2x256xf32> to vector<2xf32>
    %42 = vector.shape_cast %41 : vector<2xf32> to vector<2x1xf32>
    %43 = vector.extract_strided_slice %21 {offsets = [3, 0], sizes = [1, 2], strides = [1, 1]} : vector<4x256xf32> to vector<1x2xf32>
    %44 = vector.shape_cast %43 : vector<1x2xf32> to vector<2xf32>
    %45 = tpu.concatenate %35, %42 in 1 : vector<2x1xf32>, vector<2x1xf32> -> vector<2x2xf32>
    %46 = vector.shape_cast %44 : vector<2xf32> to vector<1x2xf32>
    %47 = vector.broadcast %46 : vector<1x2xf32> to vector<2x2xf32>
    %48 = arith.addf %45, %47 : vector<2x2xf32>
    %c0_8 = arith.constant 0 : index
    %c0_9 = arith.constant 0 : index
    %49 = vector.load %arg4[%c0_8, %c0_9] : memref<2x2xf32, #tpu.memory_space<vmem>>, vector<2x2xf32>
    tpu.vector_store %arg4[%c0_8, %c0_9], %48 {strides = array<i32>} : memref<2x2xf32, #tpu.memory_space<vmem>>, vector<2x2xf32>,
    return
  }
  func.func @transform_0(%arg0: i32) -> (i32, i32) {
    %c0_i32 = arith.constant 0 : i32
    %c0_i32_0 = arith.constant 0 : i32
    return %arg0, %c0_i32 : i32, i32
  }
  func.func @transform_1(%arg0: i32) -> (i32, i32) {
    %c0_i32 = arith.constant 0 : i32
    %c0_i32_0 = arith.constant 0 : i32
    %c0_i32_1 = arith.constant 0 : i32
    return %c0_i32, %c0_i32_0 : i32, i32
  }
  func.func @transform_2(%arg0: i32) -> (i32, i32) {
    %c0_i32 = arith.constant 0 : i32
    %c0_i32_0 = arith.constant 0 : i32
    %c0_i32_1 = arith.constant 0 : i32
    return %c0_i32, %c0_i32_0 : i32, i32
  }
  func.func @transform_3(%arg0: i32) -> (i32, i32) {
    %c0_i32 = arith.constant 0 : i32
    %c0_i32_0 = arith.constant 0 : i32
    return %arg0, %c0_i32 : i32, i32
  }
}

</mosaic_0001>

<llo_original>
// kernel: net_forward.1
$region0: #{net_forward.1}
  #allocation0 [shape = 'u32[]', space=smem, size = 0x4, offset = 0x4, fixed_abs, tag = 'smem constant byte address 0x4 - core index']
  #allocation1 [shape = 'u32[144,128]{1,0:T(1,128)}', space=vmem, size = 0x12000, scoped, tag = 'internal scratch']
  %s0 = inlined_call_operand.vmem [shape: f32[2,363], index: 0, kind: input, shape index: {}]
  %s1 = inlined_call_operand.hbm [shape: bf16[363,2304], index: 1, kind: input, shape index: {}]
  %s2 = inlined_call_operand.hbm [shape: f32[4,256], index: 2, kind: input, shape index: {}]
  %s3 = inlined_call_operand.hbm [shape: f32[2,2], index: 3, kind: output, shape index: {}]
  %s4 = sld [smem:[#allocation0]]
  $region30: #{net_forward.1} parent=0
    _
  %s6 = ssub.s32 1, %s4
  %s7 = scalar_select 0, %s6, %s4
  $region1: #{net_forward.1} parent=0
    #allocation2 [shape = 'u8[1695744]{0}', space=vmem, size = 0x19e000, scoped, tag = 'input window, operand 1, single buffered']
    #allocation3 [shape = 's32[1]{0}', space=sflag, size = 0x4, scoped, tag = 'scoped memory for net_forward.1']
    #allocation4 [shape = 's32[1]{0}', space=sflag, size = 0x4, scoped, tag = 'scoped memory for net_forward.1']
    #allocation5 [shape = 'u8[4096]{0}', space=vmem, size = 0x1000, scoped, tag = 'input window, operand 2, single buffered']
    #allocation6 [shape = 's32[1]{0}', space=sflag, size = 0x4, scoped, tag = 'scoped memory for net_forward.1']
    #allocation7 [shape = 'u8[1024]{0}', space=vmem, size = 0x400, scoped, tag = 'output window, operand 0, single buffered']
    %8 = vsyncpa [#allocation3], 0
    %9 = vsyncpa [#allocation6], 0
    %10 = vsyncpa [#allocation4], 0
    // Predicated region
    $region2: #{net_forward.1} parent=1 // pred_check
      _
    $region3: #{net_forward.1} parent=1 // pred_check_branch
      %12 = sbr.rel (0) target = $region5
    $region4: #{net_forward.1} parent=1 // pred_region
      _
    $region5: #{net_forward.1} parent=1 // pred_fallthru
      _
    // Predicated region
    $region6: #{net_forward.1} parent=1 // pred_check
      _
    $region7: #{net_forward.1} parent=1 // pred_check_branch
      %14 = sbr.rel (0) target = $region9
    $region8: #{net_forward.1} parent=1 // pred_region
      %s16 = ssub.s32 52992, 52992
      %17 = vsyncadd [#allocation3], %s16
      %s18 = sshll.u32 [#allocation2], 4
      %s19 = int_to_ptr.vmem [resolvable:$true] %s18
      %24 = dma.hbm_to_vmem [thread:$0]  %s1, 52992, %s19, [#allocation3], 1152, 1152, 72
    $region9: #{net_forward.1} parent=1 // pred_fallthru
      _
    // Predicated region
    $region10: #{net_forward.1} parent=1 // pred_check
      _
    $region11: #{net_forward.1} parent=1 // pred_check_branch
      %26 = sbr.rel (0) target = $region13
    $region12: #{net_forward.1} parent=1 // pred_region
      %s28 = ssub.s32 128, 128
      %29 = vsyncadd [#allocation6], %s28
      %s31 = sshll.u32 [#allocation5], 4
      %s32 = int_to_ptr.vmem [resolvable:$true] %s31
      %34 = dma.hbm_to_vmem [thread:$0]  %s2, 128, %s32, [#allocation6]
    $region13: #{net_forward.1} parent=1 // pred_fallthru
      _
    // Predicated region
    $region14: #{net_forward.1} parent=1 // pred_check
      _
    $region15: #{net_forward.1} parent=1 // pred_check_branch
      %36 = sbr.rel (0) target = $region17
    $region16: #{net_forward.1} parent=1 // pred_region
      %37 = dma.done [#allocation3], 52992
    $region17: #{net_forward.1} parent=1 // pred_fallthru
      _
    // Predicated region
    $region18: #{net_forward.1} parent=1 // pred_check
      _
    $region19: #{net_forward.1} parent=1 // pred_check_branch
      %39 = sbr.rel (0) target = $region21
    $region20: #{net_forward.1} parent=1 // pred_region
      %40 = dma.done [#allocation6], 128
    $region21: #{net_forward.1} parent=1 // pred_fallthru
      _
    %v42 = vld [vmem:[%s0] sm:$0x3f]
    %v44 = vcombine.high %v42, %v42
    %v46 = vunpack.c.l.s4 1983009808
    %v47 = vunpack.c.0.s8 %v46
    %v48 = vlaneseq
    %v49 = vshrl.u32 %v48, 7
    %v50 = vsub.s32 %v47, %v49
    %v51 = vrot.slane %v42, %v50
    %v53 = vunpack.c.l.s4 1983009808
    %v54 = vunpack.c.0.s8 %v53
    %v55 = vlaneseq
    %v56 = vshrl.u32 %v55, 7
    %v57 = vsub.s32 %v54, %v56
    %v58 = vrot.slane %v44, %v57
    %v59 = vcombine.high %v51, %v51
    %v63 = vpack.c.bf16 %v51, %v51
    %v64 = vpack.c.bf16 %v59, %v59
    %v65 = vpack.c.bf16 %v58, %v58
    %v66 = vld [vmem:[#allocation2] sm:$0xff]
    %v67 = vld [vmem:[#allocation2 + $0x8] sm:$0xff]
    %v68 = vld [vmem:[#allocation2 + $0x10] sm:$0xff]
    %v69 = vld [vmem:[#allocation2 + $0x18] sm:$0xff]
    %v70 = vld [vmem:[#allocation2 + $0x20] sm:$0xff]
    %v71 = vld [vmem:[#allocation2 + $0x28] sm:$0xff]
    %v72 = vld [vmem:[#allocation2 + $0x30] sm:$0xff]
    %v73 = vld [vmem:[#allocation2 + $0x38] sm:$0xff]
    %v74 = vld [vmem:[#allocation2 + $0x40] sm:$0xff]
    %v75 = vld [vmem:[#allocation2 + $0x48] sm:$0xff]
    %v76 = vld [vmem:[#allocation2 + $0x50] sm:$0xff]
    %v77 = vld [vmem:[#allocation2 + $0x58] sm:$0xff]
    %v78 = vld [vmem:[#allocation2 + $0x60] sm:$0xff]
    %v79 = vld [vmem:[#allocation2 + $0x68] sm:$0xff]
    %v80 = vld [vmem:[#allocation2 + $0x70] sm:$0xff]
    %v81 = vld [vmem:[#allocation2 + $0x78] sm:$0xff]
    %v82 = vld [vmem:[#allocation2 + $0x80] sm:$0xff]
    %v83 = vld [vmem:[#allocation2 + $0x88] sm:$0xff]
    %v84 = vld [vmem:[#allocation2 + $0x90] sm:$0xff]
    %v85 = vld [vmem:[#allocation2 + $0x98] sm:$0xff]
    %v86 = vld [vmem:[#allocation2 + $0xa0] sm:$0xff]
    %v87 = vld [vmem:[#allocation2 + $0xa8] sm:$0xff]
    %v88 = vld [vmem:[#allocation2 + $0xb0] sm:$0xff]
    %v89 = vld [vmem:[#allocation2 + $0xb8] sm:$0xff]
    %v90 = vld [vmem:[#allocation2 + $0xc0] sm:$0xff]
    %v91 = vld [vmem:[#allocation2 + $0xc8] sm:$0xff]
    %v92 = vld [vmem:[#allocation2 + $0xd0] sm:$0xff]
    %v93 = vld [vmem:[#allocation2 + $0xd8] sm:$0xff]
    %v94 = vld [vmem:[#allocation2 + $0xe0] sm:$0xff]
    %v95 = vld [vmem:[#allocation2 + $0xe8] sm:$0xff]
    %v96 = vld [vmem:[#allocation2 + $0xf0] sm:$0xff]
    %v97 = vld [vmem:[#allocation2 + $0xf8] sm:$0xff]
    %v98 = vld [vmem:[#allocation2 + $0x100] sm:$0xff]
    %v99 = vld [vmem:[#allocation2 + $0x108] sm:$0xff]
    %v100 = vld [vmem:[#allocation2 + $0x110] sm:$0xff]
    %v101 = vld [vmem:[#allocation2 + $0x118] sm:$0xff]
    %v102 = vld [vmem:[#allocation2 + $0x120] sm:$0xff]
    %v103 = vld [vmem:[#allocation2 + $0x128] sm:$0xff]
    %v104 = vld [vmem:[#allocation2 + $0x130] sm:$0xff]
    %v105 = vld [vmem:[#allocation2 + $0x138] sm:$0xff]
    %v106 = vld [vmem:[#allocation2 + $0x140] sm:$0xff]
    %v107 = vld [vmem:[#allocation2 + $0x148] sm:$0xff]
    %v108 = vld [vmem:[#allocation2 + $0x150] sm:$0xff]
    %v109 = vld [vmem:[#allocation2 + $0x158] sm:$0xff]
    %v110 = vld [vmem:[#allocation2 + $0x160] sm:$0xff]
    %v111 = vld [vmem:[#allocation2 + $0x168] sm:$0xff]
    %v112 = vld [vmem:[#allocation2 + $0x170] sm:$0xff]
    %v113 = vld [vmem:[#allocation2 + $0x178] sm:$0xff]
    %v114 = vld [vmem:[#allocation2 + $0x180] sm:$0xff]
    %v115 = vld [vmem:[#allocation2 + $0x188] sm:$0xff]
    %v116 = vld [vmem:[#allocation2 + $0x190] sm:$0xff]
    %v117 = vld [vmem:[#allocation2 + $0x198] sm:$0xff]
    %v118 = vld [vmem:[#allocation2 + $0x1a0] sm:$0xff]
    %v119 = vld [vmem:[#allocation2 + $0x1a8] sm:$0xff]
    %v120 = vld [vmem:[#allocation2 + $0x1b0] sm:$0xff]
    %v121 = vld [vmem:[#allocation2 + $0x1b8] sm:$0xff]
    %v122 = vld [vmem:[#allocation2 + $0x1c0] sm:$0xff]
    %v123 = vld [vmem:[#allocation2 + $0x1c8] sm:$0xff]
    %v124 = vld [vmem:[#allocation2 + $0x1d0] sm:$0xff]
    %v125 = vld [vmem:[#allocation2 + $0x1d8] sm:$0xff]
    %v126 = vld [vmem:[#allocation2 + $0x1e0] sm:$0xff]
    %v127 = vld [vmem:[#allocation2 + $0x1e8] sm:$0xff]
    %v128 = vld [vmem:[#allocation2 + $0x1f0] sm:$0xff]
    %v129 = vld [vmem:[#allocation2 + $0x1f8] sm:$0xff]
    %v130 = vld [vmem:[#allocation2 + $0x200] sm:$0xff]
    %v131 = vld [vmem:[#allocation2 + $0x208] sm:$0xff]
    %v132 = vld [vmem:[#allocation2 + $0x210] sm:$0xff]
    %v133 = vld [vmem:[#allocation2 + $0x218] sm:$0xff]
    %v134 = vld [vmem:[#allocation2 + $0x220] sm:$0xff]
    %v135 = vld [vmem:[#allocation2 + $0x228] sm:$0xff]
    %v136 = vld [vmem:[#allocation2 + $0x230] sm:$0xff]
    %v137 = vld [vmem:[#allocation2 + $0x238] sm:$0xff]
    %v138 = vld [vmem:[#allocation2 + $0x240] sm:$0xff]
    %v139 = vld [vmem:[#allocation2 + $0x248] sm:$0xff]
    %v140 = vld [vmem:[#allocation2 + $0x250] sm:$0xff]
    %v141 = vld [vmem:[#allocation2 + $0x258] sm:$0xff]
    %v142 = vld [vmem:[#allocation2 + $0x260] sm:$0xff]
    %v143 = vld [vmem:[#allocation2 + $0x268] sm:$0xff]
    %v144 = vld [vmem:[#allocation2 + $0x270] sm:$0xff]
    %v145 = vld [vmem:[#allocation2 + $0x278] sm:$0xff]
    %v146 = vld [vmem:[#allocation2 + $0x280] sm:$0xff]
    %v147 = vld [vmem:[#allocation2 + $0x288] sm:$0xff]
    %v148 = vld [vmem:[#allocation2 + $0x290] sm:$0xff]
    %v149 = vld [vmem:[#allocation2 + $0x298] sm:$0xff]
    %v150 = vld [vmem:[#allocation2 + $0x2a0] sm:$0xff]
    %v151 = vld [vmem:[#allocation2 + $0x2a8] sm:$0xff]
    %v152 = vld [vmem:[#allocation2 + $0x2b0] sm:$0xff]
    %v153 = vld [vmem:[#allocation2 + $0x2b8] sm:$0xff]
    %v154 = vld [vmem:[#allocation2 + $0x2c0] sm:$0xff]
    %v155 = vld [vmem:[#allocation2 + $0x2c8] sm:$0xff]
    %v156 = vld [vmem:[#allocation2 + $0x2d0] sm:$0xff]
    %v157 = vld [vmem:[#allocation2 + $0x2d8] sm:$0xff]
    %v158 = vld [vmem:[#allocation2 + $0x2e0] sm:$0xff]
    %v159 = vld [vmem:[#allocation2 + $0x2e8] sm:$0xff]
    %v160 = vld [vmem:[#allocation2 + $0x2f0] sm:$0xff]
    %v161 = vld [vmem:[#allocation2 + $0x2f8] sm:$0xff]
    %v162 = vld [vmem:[#allocation2 + $0x300] sm:$0xff]
    %v163 = vld [vmem:[#allocation2 + $0x308] sm:$0xff]
    %v164 = vld [vmem:[#allocation2 + $0x310] sm:$0xff]
    %v165 = vld [vmem:[#allocation2 + $0x318] sm:$0xff]
    %v166 = vld [vmem:[#allocation2 + $0x320] sm:$0xff]
    %v167 = vld [vmem:[#allocation2 + $0x328] sm:$0xff]
    %v168 = vld [vmem:[#allocation2 + $0x330] sm:$0xff]
    %v169 = vld [vmem:[#allocation2 + $0x338] sm:$0xff]
    %v170 = vld [vmem:[#allocation2 + $0x340] sm:$0xff]
    %v171 = vld [vmem:[#allocation2 + $0x348] sm:$0xff]
    %v172 = vld [vmem:[#allocation2 + $0x350] sm:$0xff]
    %v173 = vld [vmem:[#allocation2 + $0x358] sm:$0xff]
    %v174 = vld [vmem:[#allocation2 + $0x360] sm:$0xff]
    %v175 = vld [vmem:[#allocation2 + $0x368] sm:$0xff]
    %v176 = vld [vmem:[#allocation2 + $0x370] sm:$0xff]
    %v177 = vld [vmem:[#allocation2 + $0x378] sm:$0xff]
    %v178 = vld [vmem:[#allocation2 + $0x380] sm:$0xff]
    %v179 = vld [vmem:[#allocation2 + $0x388] sm:$0xff]
    %v180 = vld [vmem:[#allocation2 + $0x390] sm:$0xff]
    %v181 = vld [vmem:[#allocation2 + $0x398] sm:$0xff]
    %v182 = vld [vmem:[#allocation2 + $0x3a0] sm:$0xff]
    %v183 = vld [vmem:[#allocation2 + $0x3a8] sm:$0xff]
    %v184 = vld [vmem:[#allocation2 + $0x3b0] sm:$0xff]
    %v185 = vld [vmem:[#allocation2 + $0x3b8] sm:$0xff]
    %v186 = vld [vmem:[#allocation2 + $0x3c0] sm:$0xff]
    %v187 = vld [vmem:[#allocation2 + $0x3c8] sm:$0xff]
    %v188 = vld [vmem:[#allocation2 + $0x3d0] sm:$0xff]
    %v189 = vld [vmem:[#allocation2 + $0x3d8] sm:$0xff]
    %v190 = vld [vmem:[#allocation2 + $0x3e0] sm:$0xff]
    %v191 = vld [vmem:[#allocation2 + $0x3e8] sm:$0xff]
    %v192 = vld [vmem:[#allocation2 + $0x3f0] sm:$0xff]
    %v193 = vld [vmem:[#allocation2 + $0x3f8] sm:$0xff]
    %v194 = vld [vmem:[#allocation2 + $0x400] sm:$0xff]
    %v195 = vld [vmem:[#allocation2 + $0x408] sm:$0xff]
    %v196 = vld [vmem:[#allocation2 + $0x410] sm:$0xff]
    %v197 = vld [vmem:[#allocation2 + $0x418] sm:$0xff]
    %v198 = vld [vmem:[#allocation2 + $0x420] sm:$0xff]
    %v199 = vld [vmem:[#allocation2 + $0x428] sm:$0xff]
    %v200 = vld [vmem:[#allocation2 + $0x430] sm:$0xff]
    %v201 = vld [vmem:[#allocation2 + $0x438] sm:$0xff]
    %v202 = vld [vmem:[#allocation2 + $0x440] sm:$0xff]
    %v203 = vld [vmem:[#allocation2 + $0x448] sm:$0xff]
    %v204 = vld [vmem:[#allocation2 + $0x450] sm:$0xff]
    %v205 = vld [vmem:[#allocation2 + $0x458] sm:$0xff]
    %v206 = vld [vmem:[#allocation2 + $0x460] sm:$0xff]
    %v207 = vld [vmem:[#allocation2 + $0x468] sm:$0xff]
    %v208 = vld [vmem:[#allocation2 + $0x470] sm:$0xff]
    %v209 = vld [vmem:[#allocation2 + $0x478] sm:$0xff]
    %v210 = vld [vmem:[#allocation2 + $0x480] sm:$0xff]
    %v211 = vld [vmem:[#allocation2 + $0x488] sm:$0xff]
    %v212 = vld [vmem:[#allocation2 + $0x490] sm:$0xff]
    %v213 = vld [vmem:[#allocation2 + $0x498] sm:$0xff]
    %v214 = vld [vmem:[#allocation2 + $0x4a0] sm:$0xff]
    %v215 = vld [vmem:[#allocation2 + $0x4a8] sm:$0xff]
    %v216 = vld [vmem:[#allocation2 + $0x4b0] sm:$0xff]
    %v217 = vld [vmem:[#allocation2 + $0x4b8] sm:$0xff]
    %v218 = vld [vmem:[#allocation2 + $0x4c0] sm:$0xff]
    %v219 = vld [vmem:[#allocation2 + $0x4c8] sm:$0xff]
    %v220 = vld [vmem:[#allocation2 + $0x4d0] sm:$0xff]
    %v221 = vld [vmem:[#allocation2 + $0x4d8] sm:$0xff]
    %v222 = vld [vmem:[#allocation2 + $0x4e0] sm:$0xff]
    %v223 = vld [vmem:[#allocation2 + $0x4e8] sm:$0xff]
    %v224 = vld [vmem:[#allocation2 + $0x4f0] sm:$0xff]
    %v225 = vld [vmem:[#allocation2 + $0x4f8] sm:$0xff]
    %v226 = vld [vmem:[#allocation2 + $0x500] sm:$0xff]
    %v227 = vld [vmem:[#allocation2 + $0x508] sm:$0xff]
    %v228 = vld [vmem:[#allocation2 + $0x510] sm:$0xff]
    %v229 = vld [vmem:[#allocation2 + $0x518] sm:$0xff]
    %v230 = vld [vmem:[#allocation2 + $0x520] sm:$0xff]
    %v231 = vld [vmem:[#allocation2 + $0x528] sm:$0xff]
    %v232 = vld [vmem:[#allocation2 + $0x530] sm:$0xff]
    %v233 = vld [vmem:[#allocation2 + $0x538] sm:$0xff]
    %v234 = vld [vmem:[#allocation2 + $0x540] sm:$0xff]
    %v235 = vld [vmem:[#allocation2 + $0x548] sm:$0xff]
    %v236 = vld [vmem:[#allocation2 + $0x550] sm:$0xff]
    %v237 = vld [vmem:[#allocation2 + $0x558] sm:$0xff]
    %v238 = vld [vmem:[#allocation2 + $0x560] sm:$0xff]
    %v239 = vld [vmem:[#allocation2 + $0x568] sm:$0xff]
    %v240 = vld [vmem:[#allocation2 + $0x570] sm:$0xff]
    %v241 = vld [vmem:[#allocation2 + $0x578] sm:$0xff]
    %v242 = vld [vmem:[#allocation2 + $0x580] sm:$0xff]
    %v243 = vld [vmem:[#allocation2 + $0x588] sm:$0xff]
    %v244 = vld [vmem:[#allocation2 + $0x590] sm:$0xff]
    %v245 = vld [vmem:[#allocation2 + $0x598] sm:$0xff]
    %v246 = vld [vmem:[#allocation2 + $0x5a0] sm:$0xff]
    %v247 = vld [vmem:[#allocation2 + $0x5a8] sm:$0xff]
    %v248 = vld [vmem:[#allocation2 + $0x5b0] sm:$0xff]
    %v249 = vld [vmem:[#allocation2 + $0x5b8] sm:$0xff]
    %v250 = vld [vmem:[#allocation2 + $0x5c0] sm:$0xff]
    %v251 = vld [vmem:[#allocation2 + $0x5c8] sm:$0xff]
    %v252 = vld [vmem:[#allocation2 + $0x5d0] sm:$0xff]
    %v253 = vld [vmem:[#allocation2 + $0x5d8] sm:$0xff]
    %v254 = vld [vmem:[#allocation2 + $0x5e0] sm:$0xff]
    %v255 = vld [vmem:[#allocation2 + $0x5e8] sm:$0xff]
    %v256 = vld [vmem:[#allocation2 + $0x5f0] sm:$0xff]
    %v257 = vld [vmem:[#allocation2 + $0x5f8] sm:$0xff]
    %v258 = vld [vmem:[#allocation2 + $0x600] sm:$0xff]
    %v259 = vld [vmem:[#allocation2 + $0x608] sm:$0xff]
    %v260 = vld [vmem:[#allocation2 + $0x610] sm:$0xff]
    %v261 = vld [vmem:[#allocation2 + $0x618] sm:$0xff]
    %v262 = vld [vmem:[#allocation2 + $0x620] sm:$0xff]
    %v263 = vld [vmem:[#allocation2 + $0x628] sm:$0xff]
    %v264 = vld [vmem:[#allocation2 + $0x630] sm:$0xff]
    %v265 = vld [vmem:[#allocation2 + $0x638] sm:$0xff]
    %v266 = vld [vmem:[#allocation2 + $0x640] sm:$0xff]
    %v267 = vld [vmem:[#allocation2 + $0x648] sm:$0xff]
    %v268 = vld [vmem:[#allocation2 + $0x650] sm:$0xff]
    %v269 = vld [vmem:[#allocation2 + $0x658] sm:$0xff]
    %v270 = vld [vmem:[#allocation2 + $0x660] sm:$0xff]
    %v271 = vld [vmem:[#allocation2 + $0x668] sm:$0xff]
    %v272 = vld [vmem:[#allocation2 + $0x670] sm:$0xff]
    %v273 = vld [vmem:[#allocation2 + $0x678] sm:$0xff]
    %v274 = vld [vmem:[#allocation2 + $0x680] sm:$0xff]
    %v275 = vld [vmem:[#allocation2 + $0x688] sm:$0xff]
    %v276 = vld [vmem:[#allocation2 + $0x690] sm:$0xff]
    %v277 = vld [vmem:[#allocation2 + $0x698] sm:$0xff]
    %v278 = vld [vmem:[#allocation2 + $0x6a0] sm:$0xff]
    %v279 = vld [vmem:[#allocation2 + $0x6a8] sm:$0xff]
    %v280 = vld [vmem:[#allocation2 + $0x6b0] sm:$0xff]
    %v281 = vld [vmem:[#allocation2 + $0x6b8] sm:$0xff]
    %v282 = vld [vmem:[#allocation2 + $0x6c0] sm:$0xff]
    %v283 = vld [vmem:[#allocation2 + $0x6c8] sm:$0xff]
    %v284 = vld [vmem:[#allocation2 + $0x6d0] sm:$0xff]
    %v285 = vld [vmem:[#allocation2 + $0x6d8] sm:$0xff]
    %v286 = vld [vmem:[#allocation2 + $0x6e0] sm:$0xff]
    %v287 = vld [vmem:[#allocation2 + $0x6e8] sm:$0xff]
    %v288 = vld [vmem:[#allocation2 + $0x6f0] sm:$0xff]
    %v289 = vld [vmem:[#allocation2 + $0x6f8] sm:$0xff]
    %v290 = vld [vmem:[#allocation2 + $0x700] sm:$0xff]
    %v291 = vld [vmem:[#allocation2 + $0x708] sm:$0xff]
    %v292 = vld [vmem:[#allocation2 + $0x710] sm:$0xff]
    %v293 = vld [vmem:[#allocation2 + $0x718] sm:$0xff]
    %v294 = vld [vmem:[#allocation2 + $0x720] sm:$0xff]
    %v295 = vld [vmem:[#allocation2 + $0x728] sm:$0xff]
    %v296 = vld [vmem:[#allocation2 + $0x730] sm:$0xff]
    %v297 = vld [vmem:[#allocation2 + $0x738] sm:$0xff]
    %v298 = vld [vmem:[#allocation2 + $0x740] sm:$0xff]
    %v299 = vld [vmem:[#allocation2 + $0x748] sm:$0xff]
    %v300 = vld [vmem:[#allocation2 + $0x750] sm:$0xff]
    %v301 = vld [vmem:[#allocation2 + $0x758] sm:$0xff]
    %v302 = vld [vmem:[#allocation2 + $0x760] sm:$0xff]
    %v303 = vld [vmem:[#allocation2 + $0x768] sm:$0xff]
    %v304 = vld [vmem:[#allocation2 + $0x770] sm:$0xff]
    %v305 = vld [vmem:[#allocation2 + $0x778] sm:$0xff]
    %v306 = vld [vmem:[#allocation2 + $0x780] sm:$0xff]
    %v307 = vld [vmem:[#allocation2 + $0x788] sm:$0xff]
    %v308 = vld [vmem:[#allocation2 + $0x790] sm:$0xff]
    %v309 = vld [vmem:[#allocation2 + $0x798] sm:$0xff]
    %v310 = vld [vmem:[#allocation2 + $0x7a0] sm:$0xff]
    %v311 = vld [vmem:[#allocation2 + $0x7a8] sm:$0xff]
    %v312 = vld [vmem:[#allocation2 + $0x7b0] sm:$0xff]
    %v313 = vld [vmem:[#allocation2 + $0x7b8] sm:$0xff]
    %v314 = vld [vmem:[#allocation2 + $0x7c0] sm:$0xff]
    %v315 = vld [vmem:[#allocation2 + $0x7c8] sm:$0xff]
    %v316 = vld [vmem:[#allocation2 + $0x7d0] sm:$0xff]
    %v317 = vld [vmem:[#allocation2 + $0x7d8] sm:$0xff]
    %v318 = vld [vmem:[#allocation2 + $0x7e0] sm:$0xff]
    %v319 = vld [vmem:[#allocation2 + $0x7e8] sm:$0xff]
    %v320 = vld [vmem:[#allocation2 + $0x7f0] sm:$0xff]
    %v321 = vld [vmem:[#allocation2 + $0x7f8] sm:$0xff]
    %v322 = vld [vmem:[#allocation2 + $0x800] sm:$0xff]
    %v323 = vld [vmem:[#allocation2 + $0x808] sm:$0xff]
    %v324 = vld [vmem:[#allocation2 + $0x810] sm:$0xff]
    %v325 = vld [vmem:[#allocation2 + $0x818] sm:$0xff]
    %v326 = vld [vmem:[#allocation2 + $0x820] sm:$0xff]
    %v327 = vld [vmem:[#allocation2 + $0x828] sm:$0xff]
    %v328 = vld [vmem:[#allocation2 + $0x830] sm:$0xff]
    %v329 = vld [vmem:[#allocation2 + $0x838] sm:$0xff]
    %v330 = vld [vmem:[#allocation2 + $0x840] sm:$0xff]
    %v331 = vld [vmem:[#allocation2 + $0x848] sm:$0xff]
    %v332 = vld [vmem:[#allocation2 + $0x850] sm:$0xff]
    %v333 = vld [vmem:[#allocation2 + $0x858] sm:$0xff]
    %v334 = vld [vmem:[#allocation2 + $0x860] sm:$0xff]
    %v335 = vld [vmem:[#allocation2 + $0x868] sm:$0xff]
    %v336 = vld [vmem:[#allocation2 + $0x870] sm:$0xff]
    %v337 = vld [vmem:[#allocation2 + $0x878] sm:$0xff]
    %v338 = vld [vmem:[#allocation2 + $0x880] sm:$0xff]
    %v339 = vld [vmem:[#allocation2 + $0x888] sm:$0xff]
    %v340 = vld [vmem:[#allocation2 + $0x890] sm:$0xff]
    %v341 = vld [vmem:[#allocation2 + $0x898] sm:$0xff]
    %v342 = vld [vmem:[#allocation2 + $0x8a0] sm:$0xff]
    %v343 = vld [vmem:[#allocation2 + $0x8a8] sm:$0xff]
    %v344 = vld [vmem:[#allocation2 + $0x8b0] sm:$0xff]
    %v345 = vld [vmem:[#allocation2 + $0x8b8] sm:$0xff]
    %v346 = vld [vmem:[#allocation2 + $0x8c0] sm:$0xff]
    %v347 = vld [vmem:[#allocation2 + $0x8c8] sm:$0xff]
    %v348 = vld [vmem:[#allocation2 + $0x8d0] sm:$0xff]
    %v349 = vld [vmem:[#allocation2 + $0x8d8] sm:$0xff]
    %v350 = vld [vmem:[#allocation2 + $0x8e0] sm:$0xff]
    %v351 = vld [vmem:[#allocation2 + $0x8e8] sm:$0xff]
    %v352 = vld [vmem:[#allocation2 + $0x8f0] sm:$0xff]
    %v353 = vld [vmem:[#allocation2 + $0x8f8] sm:$0xff]
    %v354 = vld [vmem:[#allocation2 + $0x900] sm:$0xff]
    %v355 = vld [vmem:[#allocation2 + $0x908] sm:$0xff]
    %v356 = vld [vmem:[#allocation2 + $0x910] sm:$0xff]
    %v357 = vld [vmem:[#allocation2 + $0x918] sm:$0xff]
    %v358 = vld [vmem:[#allocation2 + $0x920] sm:$0xff]
    %v359 = vld [vmem:[#allocation2 + $0x928] sm:$0xff]
    %v360 = vld [vmem:[#allocation2 + $0x930] sm:$0xff]
    %v361 = vld [vmem:[#allocation2 + $0x938] sm:$0xff]
    %v362 = vld [vmem:[#allocation2 + $0x940] sm:$0xff]
    %v363 = vld [vmem:[#allocation2 + $0x948] sm:$0xff]
    %v364 = vld [vmem:[#allocation2 + $0x950] sm:$0xff]
    %v365 = vld [vmem:[#allocation2 + $0x958] sm:$0xff]
    %v366 = vld [vmem:[#allocation2 + $0x960] sm:$0xff]
    %v367 = vld [vmem:[#allocation2 + $0x968] sm:$0xff]
    %v368 = vld [vmem:[#allocation2 + $0x970] sm:$0xff]
    %v369 = vld [vmem:[#allocation2 + $0x978] sm:$0xff]
    %v370 = vld [vmem:[#allocation2 + $0x980] sm:$0xff]
    %v371 = vld [vmem:[#allocation2 + $0x988] sm:$0xff]
    %v372 = vld [vmem:[#allocation2 + $0x990] sm:$0xff]
    %v373 = vld [vmem:[#allocation2 + $0x998] sm:$0xff]
    %v374 = vld [vmem:[#allocation2 + $0x9a0] sm:$0xff]
    %v375 = vld [vmem:[#allocation2 + $0x9a8] sm:$0xff]
    %v376 = vld [vmem:[#allocation2 + $0x9b0] sm:$0xff]
    %v377 = vld [vmem:[#allocation2 + $0x9b8] sm:$0xff]
    %v378 = vld [vmem:[#allocation2 + $0x9c0] sm:$0xff]
    %v379 = vld [vmem:[#allocation2 + $0x9c8] sm:$0xff]
    %v380 = vld [vmem:[#allocation2 + $0x9d0] sm:$0xff]
    %v381 = vld [vmem:[#allocation2 + $0x9d8] sm:$0xff]
    %v382 = vld [vmem:[#allocation2 + $0x9e0] sm:$0xff]
    %v383 = vld [vmem:[#allocation2 + $0x9e8] sm:$0xff]
    %v384 = vld [vmem:[#allocation2 + $0x9f0] sm:$0xff]
    %v385 = vld [vmem:[#allocation2 + $0x9f8] sm:$0xff]
    %v386 = vld [vmem:[#allocation2 + $0xa00] sm:$0xff]
    %v387 = vld [vmem:[#allocation2 + $0xa08] sm:$0xff]
    %v388 = vld [vmem:[#allocation2 + $0xa10] sm:$0xff]
    %v389 = vld [vmem:[#allocation2 + $0xa18] sm:$0xff]
    %v390 = vld [vmem:[#allocation2 + $0xa20] sm:$0xff]
    %v391 = vld [vmem:[#allocation2 + $0xa28] sm:$0xff]
    %v392 = vld [vmem:[#allocation2 + $0xa30] sm:$0xff]
    %v393 = vld [vmem:[#allocation2 + $0xa38] sm:$0xff]
    %v394 = vld [vmem:[#allocation2 + $0xa40] sm:$0xff]
    %v395 = vld [vmem:[#allocation2 + $0xa48] sm:$0xff]
    %v396 = vld [vmem:[#allocation2 + $0xa50] sm:$0xff]
    %v397 = vld [vmem:[#allocation2 + $0xa58] sm:$0xff]
    %v398 = vld [vmem:[#allocation2 + $0xa60] sm:$0xff]
    %v399 = vld [vmem:[#allocation2 + $0xa68] sm:$0xff]
    %v400 = vld [vmem:[#allocation2 + $0xa70] sm:$0xff]
    %v401 = vld [vmem:[#allocation2 + $0xa78] sm:$0xff]
    %v402 = vld [vmem:[#allocation2 + $0xa80] sm:$0xff]
    %v403 = vld [vmem:[#allocation2 + $0xa88] sm:$0xff]
    %v404 = vld [vmem:[#allocation2 + $0xa90] sm:$0xff]
    %v405 = vld [vmem:[#allocation2 + $0xa98] sm:$0xff]
    %v406 = vld [vmem:[#allocation2 + $0xaa0] sm:$0xff]
    %v407 = vld [vmem:[#allocation2 + $0xaa8] sm:$0xff]
    %v408 = vld [vmem:[#allocation2 + $0xab0] sm:$0xff]
    %v409 = vld [vmem:[#allocation2 + $0xab8] sm:$0xff]
    %v410 = vld [vmem:[#allocation2 + $0xac0] sm:$0xff]
    %v411 = vld [vmem:[#allocation2 + $0xac8] sm:$0xff]
    %v412 = vld [vmem:[#allocation2 + $0xad0] sm:$0xff]
    %v413 = vld [vmem:[#allocation2 + $0xad8] sm:$0xff]
    %v414 = vld [vmem:[#allocation2 + $0xae0] sm:$0xff]
    %v415 = vld [vmem:[#allocation2 + $0xae8] sm:$0xff]
    %v416 = vld [vmem:[#allocation2 + $0xaf0] sm:$0xff]
    %v417 = vld [vmem:[#allocation2 + $0xaf8] sm:$0xff]
    %v418 = vld [vmem:[#allocation2 + $0xb00] sm:$0xff]
    %v419 = vld [vmem:[#allocation2 + $0xb08] sm:$0xff]
    %v420 = vld [vmem:[#allocation2 + $0xb10] sm:$0xff]
    %v421 = vld [vmem:[#allocation2 + $0xb18] sm:$0xff]
    %v422 = vld [vmem:[#allocation2 + $0xb20] sm:$0xff]
    %v423 = vld [vmem:[#allocation2 + $0xb28] sm:$0xff]
    %v424 = vld [vmem:[#allocation2 + $0xb30] sm:$0xff]
    %v425 = vld [vmem:[#allocation2 + $0xb38] sm:$0xff]
    %v426 = vld [vmem:[#allocation2 + $0xb40] sm:$0xff]
    %v427 = vld [vmem:[#allocation2 + $0xb48] sm:$0xff]
    %v428 = vld [vmem:[#allocation2 + $0xb50] sm:$0xff]
    %v429 = vld [vmem:[#allocation2 + $0xb58] sm:$0xff]
    %v430 = vld [vmem:[#allocation2 + $0xb60] sm:$0xff]
    %v431 = vld [vmem:[#allocation2 + $0xb68] sm:$0xff]
    %v432 = vld [vmem:[#allocation2 + $0xb70] sm:$0xff]
    %v433 = vld [vmem:[#allocation2 + $0xb78] sm:$0xff]
    %v434 = vld [vmem:[#allocation2 + $0xb80] sm:$0xff]
    %v435 = vld [vmem:[#allocation2 + $0xb88] sm:$0xff]
    %v436 = vld [vmem:[#allocation2 + $0xb90] sm:$0xff]
    %v437 = vld [vmem:[#allocation2 + $0xb98] sm:$0xff]
    %v438 = vld [vmem:[#allocation2 + $0xba0] sm:$0xff]
    %v439 = vld [vmem:[#allocation2 + $0xba8] sm:$0xff]
    %v440 = vld [vmem:[#allocation2 + $0xbb0] sm:$0xff]
    %v441 = vld [vmem:[#allocation2 + $0xbb8] sm:$0xff]
    %v442 = vld [vmem:[#allocation2 + $0xbc0] sm:$0xff]
    %v443 = vld [vmem:[#allocation2 + $0xbc8] sm:$0xff]
    %v444 = vld [vmem:[#allocation2 + $0xbd0] sm:$0xff]
    %v445 = vld [vmem:[#allocation2 + $0xbd8] sm:$0xff]
    %v446 = vld [vmem:[#allocation2 + $0xbe0] sm:$0xff]
    %v447 = vld [vmem:[#allocation2 + $0xbe8] sm:$0xff]
    %v448 = vld [vmem:[#allocation2 + $0xbf0] sm:$0xff]
    %v449 = vld [vmem:[#allocation2 + $0xbf8] sm:$0xff]
    %v450 = vld [vmem:[#allocation2 + $0xc00] sm:$0xff]
    %v451 = vld [vmem:[#allocation2 + $0xc08] sm:$0xff]
    %v452 = vld [vmem:[#allocation2 + $0xc10] sm:$0xff]
    %v453 = vld [vmem:[#allocation2 + $0xc18] sm:$0xff]
    %v454 = vld [vmem:[#allocation2 + $0xc20] sm:$0xff]
    %v455 = vld [vmem:[#allocation2 + $0xc28] sm:$0xff]
    %v456 = vld [vmem:[#allocation2 + $0xc30] sm:$0xff]
    %v457 = vld [vmem:[#allocation2 + $0xc38] sm:$0xff]
    %v458 = vld [vmem:[#allocation2 + $0xc40] sm:$0xff]
    %v459 = vld [vmem:[#allocation2 + $0xc48] sm:$0xff]
    %v460 = vld [vmem:[#allocation2 + $0xc50] sm:$0xff]
    %v461 = vld [vmem:[#allocation2 + $0xc58] sm:$0xff]
    %v462 = vld [vmem:[#allocation2 + $0xc60] sm:$0xff]
    %v463 = vld [vmem:[#allocation2 + $0xc68] sm:$0xff]
    %v464 = vld [vmem:[#allocation2 + $0xc70] sm:$0xff]
    %v465 = vld [vmem:[#allocation2 + $0xc78] sm:$0xff]
    %v466 = vld [vmem:[#allocation2 + $0xc80] sm:$0xff]
    %v467 = vld [vmem:[#allocation2 + $0xc88] sm:$0xff]
    %v468 = vld [vmem:[#allocation2 + $0xc90] sm:$0xff]
    %v469 = vld [vmem:[#allocation2 + $0xc98] sm:$0xff]
    %v470 = vld [vmem:[#allocation2 + $0xca0] sm:$0xff]
    %v471 = vld [vmem:[#allocation2 + $0xca8] sm:$0x33]
    %v472 = vld [vmem:[#allocation2 + $0xcb0] sm:$0x33]
    %v473 = vld [vmem:[#allocation2 + $0xcb8] sm:$0x33]
    %v474 = vld [vmem:[#allocation2 + $0xcc0] sm:$0x33]
    %v475 = vld [vmem:[#allocation2 + $0xcc8] sm:$0x33]
    %v476 = vld [vmem:[#allocation2 + $0xcd0] sm:$0x33]
    %v477 = vld [vmem:[#allocation2 + $0xcd8] sm:$0x33]
    %v478 = vld [vmem:[#allocation2 + $0xce0] sm:$0x33]
    %v479 = vld [vmem:[#allocation2 + $0xce8] sm:$0x33]
    %v894 = vunpack.c.l.b16 %v66
    %v895 = vunpack.c.h.b16 %v66
    %v896 = vunpack.c.l.b16 %v67
    %v897 = vunpack.c.h.b16 %v67
    %v898 = vunpack.c.l.b16 %v68
    %v899 = vunpack.c.h.b16 %v68
    %v900 = vunpack.c.l.b16 %v69
    %v901 = vunpack.c.h.b16 %v69
    %v902 = vunpack.c.l.b16 %v70
    %v903 = vunpack.c.h.b16 %v70
    %v904 = vunpack.c.l.b16 %v71
    %v905 = vunpack.c.h.b16 %v71
    %v906 = vunpack.c.l.b16 %v72
    %v907 = vunpack.c.h.b16 %v72
    %v908 = vunpack.c.l.b16 %v73
    %v909 = vunpack.c.h.b16 %v73
    %v910 = vunpack.c.l.b16 %v74
    %v911 = vunpack.c.h.b16 %v74
    %v912 = vunpack.c.l.b16 %v75
    %v913 = vunpack.c.h.b16 %v75
    %v914 = vunpack.c.l.b16 %v76
    %v915 = vunpack.c.h.b16 %v76
    %v916 = vunpack.c.l.b16 %v77
    %v917 = vunpack.c.h.b16 %v77
    %v918 = vunpack.c.l.b16 %v78
    %v919 = vunpack.c.h.b16 %v78
    %v920 = vunpack.c.l.b16 %v79
    %v921 = vunpack.c.h.b16 %v79
    %v922 = vunpack.c.l.b16 %v80
    %v923 = vunpack.c.h.b16 %v80
    %v924 = vunpack.c.l.b16 %v81
    %v925 = vunpack.c.h.b16 %v81
    %v926 = vunpack.c.l.b16 %v82
    %v927 = vunpack.c.h.b16 %v82
    %v928 = vunpack.c.l.b16 %v83
    %v929 = vunpack.c.h.b16 %v83
    %v930 = vunpack.c.l.b16 %v84
    %v931 = vunpack.c.h.b16 %v84
    %v932 = vunpack.c.l.b16 %v85
    %v933 = vunpack.c.h.b16 %v85
    %v934 = vunpack.c.l.b16 %v86
    %v935 = vunpack.c.h.b16 %v86
    %v936 = vunpack.c.l.b16 %v87
    %v937 = vunpack.c.h.b16 %v87
    %v938 = vunpack.c.l.b16 %v88
    %v939 = vunpack.c.h.b16 %v88
    %v940 = vunpack.c.l.b16 %v89
    %v941 = vunpack.c.h.b16 %v89
    %v942 = vunpack.c.l.b16 %v90
    %v943 = vunpack.c.h.b16 %v90
    %v944 = vunpack.c.l.b16 %v91
    %v945 = vunpack.c.h.b16 %v91
    %v946 = vunpack.c.l.b16 %v92
    %v947 = vunpack.c.h.b16 %v92
    %v948 = vunpack.c.l.b16 %v93
    %v949 = vunpack.c.h.b16 %v93
    %v950 = vunpack.c.l.b16 %v94
    %v951 = vunpack.c.h.b16 %v94
    %v952 = vunpack.c.l.b16 %v95
    %v953 = vunpack.c.h.b16 %v95
    %v954 = vunpack.c.l.b16 %v96
    %v955 = vunpack.c.h.b16 %v96
    %v956 = vunpack.c.l.b16 %v97
    %v957 = vunpack.c.h.b16 %v97
    %v958 = vunpack.c.l.b16 %v98
    %v959 = vunpack.c.h.b16 %v98
    %v960 = vunpack.c.l.b16 %v99
    %v961 = vunpack.c.h.b16 %v99
    %v962 = vunpack.c.l.b16 %v100
    %v963 = vunpack.c.h.b16 %v100
    %v964 = vunpack.c.l.b16 %v101
    %v965 = vunpack.c.h.b16 %v101
    %v966 = vunpack.c.l.b16 %v102
    %v967 = vunpack.c.h.b16 %v102
    %v968 = vunpack.c.l.b16 %v103
    %v969 = vunpack.c.h.b16 %v103
    %v970 = vunpack.c.l.b16 %v104
    %v971 = vunpack.c.h.b16 %v104
    %v972 = vunpack.c.l.b16 %v105
    %v973 = vunpack.c.h.b16 %v105
    %v974 = vunpack.c.l.b16 %v106
    %v975 = vunpack.c.h.b16 %v106
    %v976 = vunpack.c.l.b16 %v107
    %v977 = vunpack.c.h.b16 %v107
    %v978 = vunpack.c.l.b16 %v108
    %v979 = vunpack.c.h.b16 %v108
    %v980 = vunpack.c.l.b16 %v109
    %v981 = vunpack.c.h.b16 %v109
    %v982 = vunpack.c.l.b16 %v110
    %v983 = vunpack.c.h.b16 %v110
    %v984 = vunpack.c.l.b16 %v111
    %v985 = vunpack.c.h.b16 %v111
    %v986 = vunpack.c.l.b16 %v112
    %v987 = vunpack.c.h.b16 %v112
    %v988 = vunpack.c.l.b16 %v113
    %v989 = vunpack.c.h.b16 %v113
    %v990 = vunpack.c.l.b16 %v114
    %v991 = vunpack.c.h.b16 %v114
    %v992 = vunpack.c.l.b16 %v115
    %v993 = vunpack.c.h.b16 %v115
    %v994 = vunpack.c.l.b16 %v116
    %v995 = vunpack.c.h.b16 %v116
    %v996 = vunpack.c.l.b16 %v117
    %v997 = vunpack.c.h.b16 %v117
    %v998 = vunpack.c.l.b16 %v118
    %v999 = vunpack.c.h.b16 %v118
    %v1000 = vunpack.c.l.b16 %v119
    %v1001 = vunpack.c.h.b16 %v119
    %v1002 = vunpack.c.l.b16 %v120
    %v1003 = vunpack.c.h.b16 %v120
    %v1004 = vunpack.c.l.b16 %v121
    %v1005 = vunpack.c.h.b16 %v121
    %v1006 = vunpack.c.l.b16 %v122
    %v1007 = vunpack.c.h.b16 %v122
    %v1008 = vunpack.c.l.b16 %v123
    %v1009 = vunpack.c.h.b16 %v123
    %v1010 = vunpack.c.l.b16 %v124
    %v1011 = vunpack.c.h.b16 %v124
    %v1012 = vunpack.c.l.b16 %v125
    %v1013 = vunpack.c.h.b16 %v125
    %v1014 = vunpack.c.l.b16 %v126
    %v1015 = vunpack.c.h.b16 %v126
    %v1016 = vunpack.c.l.b16 %v127
    %v1017 = vunpack.c.h.b16 %v127
    %v1018 = vunpack.c.l.b16 %v128
    %v1019 = vunpack.c.h.b16 %v128
    %v1020 = vunpack.c.l.b16 %v129
    %v1021 = vunpack.c.h.b16 %v129
    %v1022 = vunpack.c.l.b16 %v130
    %v1023 = vunpack.c.h.b16 %v130
    %v1024 = vunpack.c.l.b16 %v131
    %v1025 = vunpack.c.h.b16 %v131
    %v1026 = vunpack.c.l.b16 %v132
    %v1027 = vunpack.c.h.b16 %v132
    %v1028 = vunpack.c.l.b16 %v133
    %v1029 = vunpack.c.h.b16 %v133
    %v1030 = vunpack.c.l.b16 %v134
    %v1031 = vunpack.c.h.b16 %v134
    %v1032 = vunpack.c.l.b16 %v135
    %v1033 = vunpack.c.h.b16 %v135
    %v1034 = vunpack.c.l.b16 %v136
    %v1035 = vunpack.c.h.b16 %v136
    %v1036 = vunpack.c.l.b16 %v137
    %v1037 = vunpack.c.h.b16 %v137
    %v1038 = vunpack.c.l.b16 %v138
    %v1039 = vunpack.c.h.b16 %v138
    %v1040 = vunpack.c.l.b16 %v139
    %v1041 = vunpack.c.h.b16 %v139
    %v1042 = vunpack.c.l.b16 %v140
    %v1043 = vunpack.c.h.b16 %v140
    %v1044 = vunpack.c.l.b16 %v141
    %v1045 = vunpack.c.h.b16 %v141
    %v1046 = vunpack.c.l.b16 %v142
    %v1047 = vunpack.c.h.b16 %v142
    %v1048 = vunpack.c.l.b16 %v143
    %v1049 = vunpack.c.h.b16 %v143
    %v1050 = vunpack.c.l.b16 %v144
    %v1051 = vunpack.c.h.b16 %v144
    %v1052 = vunpack.c.l.b16 %v145
    %v1053 = vunpack.c.h.b16 %v145
    %v1054 = vunpack.c.l.b16 %v146
    %v1055 = vunpack.c.h.b16 %v146
    %v1056 = vunpack.c.l.b16 %v147
    %v1057 = vunpack.c.h.b16 %v147
    %v1058 = vunpack.c.l.b16 %v148
    %v1059 = vunpack.c.h.b16 %v148
    %v1060 = vunpack.c.l.b16 %v149
    %v1061 = vunpack.c.h.b16 %v149
    %v1062 = vunpack.c.l.b16 %v150
    %v1063 = vunpack.c.h.b16 %v150
    %v1064 = vunpack.c.l.b16 %v151
    %v1065 = vunpack.c.h.b16 %v151
    %v1066 = vunpack.c.l.b16 %v152
    %v1067 = vunpack.c.h.b16 %v152
    %v1068 = vunpack.c.l.b16 %v153
    %v1069 = vunpack.c.h.b16 %v153
    %v1070 = vunpack.c.l.b16 %v154
    %v1071 = vunpack.c.h.b16 %v154
    %v1072 = vunpack.c.l.b16 %v155
    %v1073 = vunpack.c.h.b16 %v155
    %v1074 = vunpack.c.l.b16 %v156
    %v1075 = vunpack.c.h.b16 %v156
    %v1076 = vunpack.c.l.b16 %v157
    %v1077 = vunpack.c.h.b16 %v157
    %v1078 = vunpack.c.l.b16 %v158
    %v1079 = vunpack.c.h.b16 %v158
    %v1080 = vunpack.c.l.b16 %v159
    %v1081 = vunpack.c.h.b16 %v159
    %v1082 = vunpack.c.l.b16 %v160
    %v1083 = vunpack.c.h.b16 %v160
    %v1084 = vunpack.c.l.b16 %v161
    %v1085 = vunpack.c.h.b16 %v161
    %v1086 = vunpack.c.l.b16 %v162
    %v1087 = vunpack.c.h.b16 %v162
    %v1088 = vunpack.c.l.b16 %v163
    %v1089 = vunpack.c.h.b16 %v163
    %v1090 = vunpack.c.l.b16 %v164
    %v1091 = vunpack.c.h.b16 %v164
    %v1092 = vunpack.c.l.b16 %v165
    %v1093 = vunpack.c.h.b16 %v165
    %v1094 = vunpack.c.l.b16 %v166
    %v1095 = vunpack.c.h.b16 %v166
    %v1096 = vunpack.c.l.b16 %v167
    %v1097 = vunpack.c.h.b16 %v167
    %v1098 = vunpack.c.l.b16 %v168
    %v1099 = vunpack.c.h.b16 %v168
    %v1100 = vunpack.c.l.b16 %v169
    %v1101 = vunpack.c.h.b16 %v169
    %v1102 = vunpack.c.l.b16 %v170
    %v1103 = vunpack.c.h.b16 %v170
    %v1104 = vunpack.c.l.b16 %v171
    %v1105 = vunpack.c.h.b16 %v171
    %v1106 = vunpack.c.l.b16 %v172
    %v1107 = vunpack.c.h.b16 %v172
    %v1108 = vunpack.c.l.b16 %v173
    %v1109 = vunpack.c.h.b16 %v173
    %v1110 = vunpack.c.l.b16 %v174
    %v1111 = vunpack.c.h.b16 %v174
    %v1112 = vunpack.c.l.b16 %v175
    %v1113 = vunpack.c.h.b16 %v175
    %v1114 = vunpack.c.l.b16 %v176
    %v1115 = vunpack.c.h.b16 %v176
    %v1116 = vunpack.c.l.b16 %v177
    %v1117 = vunpack.c.h.b16 %v177
    %v1118 = vunpack.c.l.b16 %v178
    %v1119 = vunpack.c.h.b16 %v178
    %v1120 = vunpack.c.l.b16 %v179
    %v1121 = vunpack.c.h.b16 %v179
    %v1122 = vunpack.c.l.b16 %v180
    %v1123 = vunpack.c.h.b16 %v180
    %v1124 = vunpack.c.l.b16 %v181
    %v1125 = vunpack.c.h.b16 %v181
    %v1126 = vunpack.c.l.b16 %v182
    %v1127 = vunpack.c.h.b16 %v182
    %v1128 = vunpack.c.l.b16 %v183
    %v1129 = vunpack.c.h.b16 %v183
    %v1130 = vunpack.c.l.b16 %v184
    %v1131 = vunpack.c.h.b16 %v184
    %v1132 = vunpack.c.l.b16 %v185
    %v1133 = vunpack.c.h.b16 %v185
    %v1134 = vunpack.c.l.b16 %v186
    %v1135 = vunpack.c.h.b16 %v186
    %v1136 = vunpack.c.l.b16 %v187
    %v1137 = vunpack.c.h.b16 %v187
    %v1138 = vunpack.c.l.b16 %v188
    %v1139 = vunpack.c.h.b16 %v188
    %v1140 = vunpack.c.l.b16 %v189
    %v1141 = vunpack.c.h.b16 %v189
    %v1142 = vunpack.c.l.b16 %v190
    %v1143 = vunpack.c.h.b16 %v190
    %v1144 = vunpack.c.l.b16 %v191
    %v1145 = vunpack.c.h.b16 %v191
    %v1146 = vunpack.c.l.b16 %v192
    %v1147 = vunpack.c.h.b16 %v192
    %v1148 = vunpack.c.l.b16 %v193
    %v1149 = vunpack.c.h.b16 %v193
    %v1150 = vunpack.c.l.b16 %v194
    %v1151 = vunpack.c.h.b16 %v194
    %v1152 = vunpack.c.l.b16 %v195
    %v1153 = vunpack.c.h.b16 %v195
    %v1154 = vunpack.c.l.b16 %v196
    %v1155 = vunpack.c.h.b16 %v196
    %v1156 = vunpack.c.l.b16 %v197
    %v1157 = vunpack.c.h.b16 %v197
    %v1158 = vunpack.c.l.b16 %v198
    %v1159 = vunpack.c.h.b16 %v198
    %v1160 = vunpack.c.l.b16 %v199
    %v1161 = vunpack.c.h.b16 %v199
    %v1162 = vunpack.c.l.b16 %v200
    %v1163 = vunpack.c.h.b16 %v200
    %v1164 = vunpack.c.l.b16 %v201
    %v1165 = vunpack.c.h.b16 %v201
    %v1166 = vunpack.c.l.b16 %v202
    %v1167 = vunpack.c.h.b16 %v202
    %v1168 = vunpack.c.l.b16 %v203
    %v1169 = vunpack.c.h.b16 %v203
    %v1170 = vunpack.c.l.b16 %v204
    %v1171 = vunpack.c.h.b16 %v204
    %v1172 = vunpack.c.l.b16 %v205
    %v1173 = vunpack.c.h.b16 %v205
    %v1174 = vunpack.c.l.b16 %v206
    %v1175 = vunpack.c.h.b16 %v206
    %v1176 = vunpack.c.l.b16 %v207
    %v1177 = vunpack.c.h.b16 %v207
    %v1178 = vunpack.c.l.b16 %v208
    %v1179 = vunpack.c.h.b16 %v208
    %v1180 = vunpack.c.l.b16 %v209
    %v1181 = vunpack.c.h.b16 %v209
    %v1182 = vunpack.c.l.b16 %v210
    %v1183 = vunpack.c.h.b16 %v210
    %v1184 = vunpack.c.l.b16 %v211
    %v1185 = vunpack.c.h.b16 %v211
    %v1186 = vunpack.c.l.b16 %v212
    %v1187 = vunpack.c.h.b16 %v212
    %v1188 = vunpack.c.l.b16 %v213
    %v1189 = vunpack.c.h.b16 %v213
    %v1190 = vunpack.c.l.b16 %v214
    %v1191 = vunpack.c.h.b16 %v214
    %v1192 = vunpack.c.l.b16 %v215
    %v1193 = vunpack.c.h.b16 %v215
    %v1194 = vunpack.c.l.b16 %v216
    %v1195 = vunpack.c.h.b16 %v216
    %v1196 = vunpack.c.l.b16 %v217
    %v1197 = vunpack.c.h.b16 %v217
    %v1198 = vunpack.c.l.b16 %v218
    %v1199 = vunpack.c.h.b16 %v218
    %v1200 = vunpack.c.l.b16 %v219
    %v1201 = vunpack.c.h.b16 %v219
    %v1202 = vunpack.c.l.b16 %v220
    %v1203 = vunpack.c.h.b16 %v220
    %v1204 = vunpack.c.l.b16 %v221
    %v1205 = vunpack.c.h.b16 %v221
    %v1206 = vunpack.c.l.b16 %v222
    %v1207 = vunpack.c.h.b16 %v222
    %v1208 = vunpack.c.l.b16 %v223
    %v1209 = vunpack.c.h.b16 %v223
    %v1210 = vunpack.c.l.b16 %v224
    %v1211 = vunpack.c.h.b16 %v224
    %v1212 = vunpack.c.l.b16 %v225
    %v1213 = vunpack.c.h.b16 %v225
    %v1214 = vunpack.c.l.b16 %v226
    %v1215 = vunpack.c.h.b16 %v226
    %v1216 = vunpack.c.l.b16 %v227
    %v1217 = vunpack.c.h.b16 %v227
    %v1218 = vunpack.c.l.b16 %v228
    %v1219 = vunpack.c.h.b16 %v228
    %v1220 = vunpack.c.l.b16 %v229
    %v1221 = vunpack.c.h.b16 %v229
    %v1222 = vunpack.c.l.b16 %v230
    %v1223 = vunpack.c.h.b16 %v230
    %v1224 = vunpack.c.l.b16 %v231
    %v1225 = vunpack.c.h.b16 %v231
    %v1226 = vunpack.c.l.b16 %v232
    %v1227 = vunpack.c.h.b16 %v232
    %v1228 = vunpack.c.l.b16 %v233
    %v1229 = vunpack.c.h.b16 %v233
    %v1230 = vunpack.c.l.b16 %v234
    %v1231 = vunpack.c.h.b16 %v234
    %v1232 = vunpack.c.l.b16 %v235
    %v1233 = vunpack.c.h.b16 %v235
    %v1234 = vunpack.c.l.b16 %v236
    %v1235 = vunpack.c.h.b16 %v236
    %v1236 = vunpack.c.l.b16 %v237
    %v1237 = vunpack.c.h.b16 %v237
    %v1238 = vunpack.c.l.b16 %v238
    %v1239 = vunpack.c.h.b16 %v238
    %v1240 = vunpack.c.l.b16 %v239
    %v1241 = vunpack.c.h.b16 %v239
    %v1242 = vunpack.c.l.b16 %v240
    %v1243 = vunpack.c.h.b16 %v240
    %v1244 = vunpack.c.l.b16 %v241
    %v1245 = vunpack.c.h.b16 %v241
    %v1246 = vunpack.c.l.b16 %v242
    %v1247 = vunpack.c.h.b16 %v242
    %v1248 = vunpack.c.l.b16 %v243
    %v1249 = vunpack.c.h.b16 %v243
    %v1250 = vunpack.c.l.b16 %v244
    %v1251 = vunpack.c.h.b16 %v244
    %v1252 = vunpack.c.l.b16 %v245
    %v1253 = vunpack.c.h.b16 %v245
    %v1254 = vunpack.c.l.b16 %v246
    %v1255 = vunpack.c.h.b16 %v246
    %v1256 = vunpack.c.l.b16 %v247
    %v1257 = vunpack.c.h.b16 %v247
    %v1258 = vunpack.c.l.b16 %v248
    %v1259 = vunpack.c.h.b16 %v248
    %v1260 = vunpack.c.l.b16 %v249
    %v1261 = vunpack.c.h.b16 %v249
    %v1262 = vunpack.c.l.b16 %v250
    %v1263 = vunpack.c.h.b16 %v250
    %v1264 = vunpack.c.l.b16 %v251
    %v1265 = vunpack.c.h.b16 %v251
    %v1266 = vunpack.c.l.b16 %v252
    %v1267 = vunpack.c.h.b16 %v252
    %v1268 = vunpack.c.l.b16 %v253
    %v1269 = vunpack.c.h.b16 %v253
    %v1270 = vunpack.c.l.b16 %v254
    %v1271 = vunpack.c.h.b16 %v254
    %v1272 = vunpack.c.l.b16 %v255
    %v1273 = vunpack.c.h.b16 %v255
    %v1274 = vunpack.c.l.b16 %v256
    %v1275 = vunpack.c.h.b16 %v256
    %v1276 = vunpack.c.l.b16 %v257
    %v1277 = vunpack.c.h.b16 %v257
    %v1278 = vunpack.c.l.b16 %v258
    %v1279 = vunpack.c.h.b16 %v258
    %v1280 = vunpack.c.l.b16 %v259
    %v1281 = vunpack.c.h.b16 %v259
    %v1282 = vunpack.c.l.b16 %v260
    %v1283 = vunpack.c.h.b16 %v260
    %v1284 = vunpack.c.l.b16 %v261
    %v1285 = vunpack.c.h.b16 %v261
    %v1286 = vunpack.c.l.b16 %v262
    %v1287 = vunpack.c.h.b16 %v262
    %v1288 = vunpack.c.l.b16 %v263
    %v1289 = vunpack.c.h.b16 %v263
    %v1290 = vunpack.c.l.b16 %v264
    %v1291 = vunpack.c.h.b16 %v264
    %v1292 = vunpack.c.l.b16 %v265
    %v1293 = vunpack.c.h.b16 %v265
    %v1294 = vunpack.c.l.b16 %v266
    %v1295 = vunpack.c.h.b16 %v266
    %v1296 = vunpack.c.l.b16 %v267
    %v1297 = vunpack.c.h.b16 %v267
    %v1298 = vunpack.c.l.b16 %v268
    %v1299 = vunpack.c.h.b16 %v268
    %v1300 = vunpack.c.l.b16 %v269
    %v1301 = vunpack.c.h.b16 %v269
    %v1302 = vunpack.c.l.b16 %v270
    %v1303 = vunpack.c.h.b16 %v270
    %v1304 = vunpack.c.l.b16 %v271
    %v1305 = vunpack.c.h.b16 %v271
    %v1306 = vunpack.c.l.b16 %v272
    %v1307 = vunpack.c.h.b16 %v272
    %v1308 = vunpack.c.l.b16 %v273
    %v1309 = vunpack.c.h.b16 %v273
    %v1310 = vunpack.c.l.b16 %v274
    %v1311 = vunpack.c.h.b16 %v274
    %v1312 = vunpack.c.l.b16 %v275
    %v1313 = vunpack.c.h.b16 %v275
    %v1314 = vunpack.c.l.b16 %v276
    %v1315 = vunpack.c.h.b16 %v276
    %v1316 = vunpack.c.l.b16 %v277
    %v1317 = vunpack.c.h.b16 %v277
    %v1318 = vunpack.c.l.b16 %v278
    %v1319 = vunpack.c.h.b16 %v278
    %v1320 = vunpack.c.l.b16 %v279
    %v1321 = vunpack.c.h.b16 %v279
    %v1322 = vunpack.c.l.b16 %v280
    %v1323 = vunpack.c.h.b16 %v280
    %v1324 = vunpack.c.l.b16 %v281
    %v1325 = vunpack.c.h.b16 %v281
    %v1326 = vunpack.c.l.b16 %v282
    %v1327 = vunpack.c.h.b16 %v282
    %v1328 = vunpack.c.l.b16 %v283
    %v1329 = vunpack.c.h.b16 %v283
    %v1330 = vunpack.c.l.b16 %v284
    %v1331 = vunpack.c.h.b16 %v284
    %v1332 = vunpack.c.l.b16 %v285
    %v1333 = vunpack.c.h.b16 %v285
    %v1334 = vunpack.c.l.b16 %v286
    %v1335 = vunpack.c.h.b16 %v286
    %v1336 = vunpack.c.l.b16 %v287
    %v1337 = vunpack.c.h.b16 %v287
    %v1338 = vunpack.c.l.b16 %v288
    %v1339 = vunpack.c.h.b16 %v288
    %v1340 = vunpack.c.l.b16 %v289
    %v1341 = vunpack.c.h.b16 %v289
    %v1342 = vunpack.c.l.b16 %v290
    %v1343 = vunpack.c.h.b16 %v290
    %v1344 = vunpack.c.l.b16 %v291
    %v1345 = vunpack.c.h.b16 %v291
    %v1346 = vunpack.c.l.b16 %v292
    %v1347 = vunpack.c.h.b16 %v292
    %v1348 = vunpack.c.l.b16 %v293
    %v1349 = vunpack.c.h.b16 %v293
    %v1350 = vunpack.c.l.b16 %v294
    %v1351 = vunpack.c.h.b16 %v294
    %v1352 = vunpack.c.l.b16 %v295
    %v1353 = vunpack.c.h.b16 %v295
    %v1354 = vunpack.c.l.b16 %v296
    %v1355 = vunpack.c.h.b16 %v296
    %v1356 = vunpack.c.l.b16 %v297
    %v1357 = vunpack.c.h.b16 %v297
    %v1358 = vunpack.c.l.b16 %v298
    %v1359 = vunpack.c.h.b16 %v298
    %v1360 = vunpack.c.l.b16 %v299
    %v1361 = vunpack.c.h.b16 %v299
    %v1362 = vunpack.c.l.b16 %v300
    %v1363 = vunpack.c.h.b16 %v300
    %v1364 = vunpack.c.l.b16 %v301
    %v1365 = vunpack.c.h.b16 %v301
    %v1366 = vunpack.c.l.b16 %v302
    %v1367 = vunpack.c.h.b16 %v302
    %v1368 = vunpack.c.l.b16 %v303
    %v1369 = vunpack.c.h.b16 %v303
    %v1370 = vunpack.c.l.b16 %v304
    %v1371 = vunpack.c.h.b16 %v304
    %v1372 = vunpack.c.l.b16 %v305
    %v1373 = vunpack.c.h.b16 %v305
    %v1374 = vunpack.c.l.b16 %v306
    %v1375 = vunpack.c.h.b16 %v306
    %v1376 = vunpack.c.l.b16 %v307
    %v1377 = vunpack.c.h.b16 %v307
    %v1378 = vunpack.c.l.b16 %v308
    %v1379 = vunpack.c.h.b16 %v308
    %v1380 = vunpack.c.l.b16 %v309
    %v1381 = vunpack.c.h.b16 %v309
    %v1382 = vunpack.c.l.b16 %v310
    %v1383 = vunpack.c.h.b16 %v310
    %v1384 = vunpack.c.l.b16 %v311
    %v1385 = vunpack.c.h.b16 %v311
    %v1386 = vunpack.c.l.b16 %v312
    %v1387 = vunpack.c.h.b16 %v312
    %v1388 = vunpack.c.l.b16 %v313
    %v1389 = vunpack.c.h.b16 %v313
    %v1390 = vunpack.c.l.b16 %v314
    %v1391 = vunpack.c.h.b16 %v314
    %v1392 = vunpack.c.l.b16 %v315
    %v1393 = vunpack.c.h.b16 %v315
    %v1394 = vunpack.c.l.b16 %v316
    %v1395 = vunpack.c.h.b16 %v316
    %v1396 = vunpack.c.l.b16 %v317
    %v1397 = vunpack.c.h.b16 %v317
    %v1398 = vunpack.c.l.b16 %v318
    %v1399 = vunpack.c.h.b16 %v318
    %v1400 = vunpack.c.l.b16 %v319
    %v1401 = vunpack.c.h.b16 %v319
    %v1402 = vunpack.c.l.b16 %v320
    %v1403 = vunpack.c.h.b16 %v320
    %v1404 = vunpack.c.l.b16 %v321
    %v1405 = vunpack.c.h.b16 %v321
    %v1406 = vunpack.c.l.b16 %v322
    %v1407 = vunpack.c.h.b16 %v322
    %v1408 = vunpack.c.l.b16 %v323
    %v1409 = vunpack.c.h.b16 %v323
    %v1410 = vunpack.c.l.b16 %v324
    %v1411 = vunpack.c.h.b16 %v324
    %v1412 = vunpack.c.l.b16 %v325
    %v1413 = vunpack.c.h.b16 %v325
    %v1414 = vunpack.c.l.b16 %v326
    %v1415 = vunpack.c.h.b16 %v326
    %v1416 = vunpack.c.l.b16 %v327
    %v1417 = vunpack.c.h.b16 %v327
    %v1418 = vunpack.c.l.b16 %v328
    %v1419 = vunpack.c.h.b16 %v328
    %v1420 = vunpack.c.l.b16 %v329
    %v1421 = vunpack.c.h.b16 %v329
    %v1422 = vunpack.c.l.b16 %v330
    %v1423 = vunpack.c.h.b16 %v330
    %v1424 = vunpack.c.l.b16 %v331
    %v1425 = vunpack.c.h.b16 %v331
    %v1426 = vunpack.c.l.b16 %v332
    %v1427 = vunpack.c.h.b16 %v332
    %v1428 = vunpack.c.l.b16 %v333
    %v1429 = vunpack.c.h.b16 %v333
    %v1430 = vunpack.c.l.b16 %v334
    %v1431 = vunpack.c.h.b16 %v334
    %v1432 = vunpack.c.l.b16 %v335
    %v1433 = vunpack.c.h.b16 %v335
    %v1434 = vunpack.c.l.b16 %v336
    %v1435 = vunpack.c.h.b16 %v336
    %v1436 = vunpack.c.l.b16 %v337
    %v1437 = vunpack.c.h.b16 %v337
    %v1438 = vunpack.c.l.b16 %v338
    %v1439 = vunpack.c.h.b16 %v338
    %v1440 = vunpack.c.l.b16 %v339
    %v1441 = vunpack.c.h.b16 %v339
    %v1442 = vunpack.c.l.b16 %v340
    %v1443 = vunpack.c.h.b16 %v340
    %v1444 = vunpack.c.l.b16 %v341
    %v1445 = vunpack.c.h.b16 %v341
    %v1446 = vunpack.c.l.b16 %v342
    %v1447 = vunpack.c.h.b16 %v342
    %v1448 = vunpack.c.l.b16 %v343
    %v1449 = vunpack.c.h.b16 %v343
    %v1450 = vunpack.c.l.b16 %v344
    %v1451 = vunpack.c.h.b16 %v344
    %v1452 = vunpack.c.l.b16 %v345
    %v1453 = vunpack.c.h.b16 %v345
    %v1454 = vunpack.c.l.b16 %v346
    %v1455 = vunpack.c.h.b16 %v346
    %v1456 = vunpack.c.l.b16 %v347
    %v1457 = vunpack.c.h.b16 %v347
    %v1458 = vunpack.c.l.b16 %v348
    %v1459 = vunpack.c.h.b16 %v348
    %v1460 = vunpack.c.l.b16 %v349
    %v1461 = vunpack.c.h.b16 %v349
    %v1462 = vunpack.c.l.b16 %v350
    %v1463 = vunpack.c.h.b16 %v350
    %v1464 = vunpack.c.l.b16 %v351
    %v1465 = vunpack.c.h.b16 %v351
    %v1466 = vunpack.c.l.b16 %v352
    %v1467 = vunpack.c.h.b16 %v352
    %v1468 = vunpack.c.l.b16 %v353
    %v1469 = vunpack.c.h.b16 %v353
    %v1470 = vunpack.c.l.b16 %v354
    %v1471 = vunpack.c.h.b16 %v354
    %v1472 = vunpack.c.l.b16 %v355
    %v1473 = vunpack.c.h.b16 %v355
    %v1474 = vunpack.c.l.b16 %v356
    %v1475 = vunpack.c.h.b16 %v356
    %v1476 = vunpack.c.l.b16 %v357
    %v1477 = vunpack.c.h.b16 %v357
    %v1478 = vunpack.c.l.b16 %v358
    %v1479 = vunpack.c.h.b16 %v358
    %v1480 = vunpack.c.l.b16 %v359
    %v1481 = vunpack.c.h.b16 %v359
    %v1482 = vunpack.c.l.b16 %v360
    %v1483 = vunpack.c.h.b16 %v360
    %v1484 = vunpack.c.l.b16 %v361
    %v1485 = vunpack.c.h.b16 %v361
    %v1486 = vunpack.c.l.b16 %v362
    %v1487 = vunpack.c.h.b16 %v362
    %v1488 = vunpack.c.l.b16 %v363
    %v1489 = vunpack.c.h.b16 %v363
    %v1490 = vunpack.c.l.b16 %v364
    %v1491 = vunpack.c.h.b16 %v364
    %v1492 = vunpack.c.l.b16 %v365
    %v1493 = vunpack.c.h.b16 %v365
    %v1494 = vunpack.c.l.b16 %v366
    %v1495 = vunpack.c.h.b16 %v366
    %v1496 = vunpack.c.l.b16 %v367
    %v1497 = vunpack.c.h.b16 %v367
    %v1498 = vunpack.c.l.b16 %v368
    %v1499 = vunpack.c.h.b16 %v368
    %v1500 = vunpack.c.l.b16 %v369
    %v1501 = vunpack.c.h.b16 %v369
    %v1502 = vunpack.c.l.b16 %v370
    %v1503 = vunpack.c.h.b16 %v370
    %v1504 = vunpack.c.l.b16 %v371
    %v1505 = vunpack.c.h.b16 %v371
    %v1506 = vunpack.c.l.b16 %v372
    %v1507 = vunpack.c.h.b16 %v372
    %v1508 = vunpack.c.l.b16 %v373
    %v1509 = vunpack.c.h.b16 %v373
    %v1510 = vunpack.c.l.b16 %v374
    %v1511 = vunpack.c.h.b16 %v374
    %v1512 = vunpack.c.l.b16 %v375
    %v1513 = vunpack.c.h.b16 %v375
    %v1514 = vunpack.c.l.b16 %v376
    %v1515 = vunpack.c.h.b16 %v376
    %v1516 = vunpack.c.l.b16 %v377
    %v1517 = vunpack.c.h.b16 %v377
    %v1518 = vunpack.c.l.b16 %v378
    %v1519 = vunpack.c.h.b16 %v378
    %v1520 = vunpack.c.l.b16 %v379
    %v1521 = vunpack.c.h.b16 %v379
    %v1522 = vunpack.c.l.b16 %v380
    %v1523 = vunpack.c.h.b16 %v380
    %v1524 = vunpack.c.l.b16 %v381
    %v1525 = vunpack.c.h.b16 %v381
    %v1526 = vunpack.c.l.b16 %v382
    %v1527 = vunpack.c.h.b16 %v382
    %v1528 = vunpack.c.l.b16 %v383
    %v1529 = vunpack.c.h.b16 %v383
    %v1530 = vunpack.c.l.b16 %v384
    %v1531 = vunpack.c.h.b16 %v384
    %v1532 = vunpack.c.l.b16 %v385
    %v1533 = vunpack.c.h.b16 %v385
    %v1534 = vunpack.c.l.b16 %v386
    %v1535 = vunpack.c.h.b16 %v386
    %v1536 = vunpack.c.l.b16 %v387
    %v1537 = vunpack.c.h.b16 %v387
    %v1538 = vunpack.c.l.b16 %v388
    %v1539 = vunpack.c.h.b16 %v388
    %v1540 = vunpack.c.l.b16 %v389
    %v1541 = vunpack.c.h.b16 %v389
    %v1542 = vunpack.c.l.b16 %v390
    %v1543 = vunpack.c.h.b16 %v390
    %v1544 = vunpack.c.l.b16 %v391
    %v1545 = vunpack.c.h.b16 %v391
    %v1546 = vunpack.c.l.b16 %v392
    %v1547 = vunpack.c.h.b16 %v392
    %v1548 = vunpack.c.l.b16 %v393
    %v1549 = vunpack.c.h.b16 %v393
    %v1550 = vunpack.c.l.b16 %v394
    %v1551 = vunpack.c.h.b16 %v394
    %v1552 = vunpack.c.l.b16 %v395
    %v1553 = vunpack.c.h.b16 %v395
    %v1554 = vunpack.c.l.b16 %v396
    %v1555 = vunpack.c.h.b16 %v396
    %v1556 = vunpack.c.l.b16 %v397
    %v1557 = vunpack.c.h.b16 %v397
    %v1558 = vunpack.c.l.b16 %v398
    %v1559 = vunpack.c.h.b16 %v398
    %v1560 = vunpack.c.l.b16 %v399
    %v1561 = vunpack.c.h.b16 %v399
    %v1562 = vunpack.c.l.b16 %v400
    %v1563 = vunpack.c.h.b16 %v400
    %v1564 = vunpack.c.l.b16 %v401
    %v1565 = vunpack.c.h.b16 %v401
    %v1566 = vunpack.c.l.b16 %v402
    %v1567 = vunpack.c.h.b16 %v402
    %v1568 = vunpack.c.l.b16 %v403
    %v1569 = vunpack.c.h.b16 %v403
    %v1570 = vunpack.c.l.b16 %v404
    %v1571 = vunpack.c.h.b16 %v404
    %v1572 = vunpack.c.l.b16 %v405
    %v1573 = vunpack.c.h.b16 %v405
    %v1574 = vunpack.c.l.b16 %v406
    %v1575 = vunpack.c.h.b16 %v406
    %v1576 = vunpack.c.l.b16 %v407
    %v1577 = vunpack.c.h.b16 %v407
    %v1578 = vunpack.c.l.b16 %v408
    %v1579 = vunpack.c.h.b16 %v408
    %v1580 = vunpack.c.l.b16 %v409
    %v1581 = vunpack.c.h.b16 %v409
    %v1582 = vunpack.c.l.b16 %v410
    %v1583 = vunpack.c.h.b16 %v410
    %v1584 = vunpack.c.l.b16 %v411
    %v1585 = vunpack.c.h.b16 %v411
    %v1586 = vunpack.c.l.b16 %v412
    %v1587 = vunpack.c.h.b16 %v412
    %v1588 = vunpack.c.l.b16 %v413
    %v1589 = vunpack.c.h.b16 %v413
    %v1590 = vunpack.c.l.b16 %v414
    %v1591 = vunpack.c.h.b16 %v414
    %v1592 = vunpack.c.l.b16 %v415
    %v1593 = vunpack.c.h.b16 %v415
    %v1594 = vunpack.c.l.b16 %v416
    %v1595 = vunpack.c.h.b16 %v416
    %v1596 = vunpack.c.l.b16 %v417
    %v1597 = vunpack.c.h.b16 %v417
    %v1598 = vunpack.c.l.b16 %v418
    %v1599 = vunpack.c.h.b16 %v418
    %v1600 = vunpack.c.l.b16 %v419
    %v1601 = vunpack.c.h.b16 %v419
    %v1602 = vunpack.c.l.b16 %v420
    %v1603 = vunpack.c.h.b16 %v420
    %v1604 = vunpack.c.l.b16 %v421
    %v1605 = vunpack.c.h.b16 %v421
    %v1606 = vunpack.c.l.b16 %v422
    %v1607 = vunpack.c.h.b16 %v422
    %v1608 = vunpack.c.l.b16 %v423
    %v1609 = vunpack.c.h.b16 %v423
    %v1610 = vunpack.c.l.b16 %v424
    %v1611 = vunpack.c.h.b16 %v424
    %v1612 = vunpack.c.l.b16 %v425
    %v1613 = vunpack.c.h.b16 %v425
    %v1614 = vunpack.c.l.b16 %v426
    %v1615 = vunpack.c.h.b16 %v426
    %v1616 = vunpack.c.l.b16 %v427
    %v1617 = vunpack.c.h.b16 %v427
    %v1618 = vunpack.c.l.b16 %v428
    %v1619 = vunpack.c.h.b16 %v428
    %v1620 = vunpack.c.l.b16 %v429
    %v1621 = vunpack.c.h.b16 %v429
    %v1622 = vunpack.c.l.b16 %v430
    %v1623 = vunpack.c.h.b16 %v430
    %v1624 = vunpack.c.l.b16 %v431
    %v1625 = vunpack.c.h.b16 %v431
    %v1626 = vunpack.c.l.b16 %v432
    %v1627 = vunpack.c.h.b16 %v432
    %v1628 = vunpack.c.l.b16 %v433
    %v1629 = vunpack.c.h.b16 %v433
    %v1630 = vunpack.c.l.b16 %v434
    %v1631 = vunpack.c.h.b16 %v434
    %v1632 = vunpack.c.l.b16 %v435
    %v1633 = vunpack.c.h.b16 %v435
    %v1634 = vunpack.c.l.b16 %v436
    %v1635 = vunpack.c.h.b16 %v436
    %v1636 = vunpack.c.l.b16 %v437
    %v1637 = vunpack.c.h.b16 %v437
    %v1638 = vunpack.c.l.b16 %v438
    %v1639 = vunpack.c.h.b16 %v438
    %v1640 = vunpack.c.l.b16 %v439
    %v1641 = vunpack.c.h.b16 %v439
    %v1642 = vunpack.c.l.b16 %v440
    %v1643 = vunpack.c.h.b16 %v440
    %v1644 = vunpack.c.l.b16 %v441
    %v1645 = vunpack.c.h.b16 %v441
    %v1646 = vunpack.c.l.b16 %v442
    %v1647 = vunpack.c.h.b16 %v442
    %v1648 = vunpack.c.l.b16 %v443
    %v1649 = vunpack.c.h.b16 %v443
    %v1650 = vunpack.c.l.b16 %v444
    %v1651 = vunpack.c.h.b16 %v444
    %v1652 = vunpack.c.l.b16 %v445
    %v1653 = vunpack.c.h.b16 %v445
    %v1654 = vunpack.c.l.b16 %v446
    %v1655 = vunpack.c.h.b16 %v446
    %v1656 = vunpack.c.l.b16 %v447
    %v1657 = vunpack.c.h.b16 %v447
    %v1658 = vunpack.c.l.b16 %v448
    %v1659 = vunpack.c.h.b16 %v448
    %v1660 = vunpack.c.l.b16 %v449
    %v1661 = vunpack.c.h.b16 %v449
    %v1662 = vunpack.c.l.b16 %v450
    %v1663 = vunpack.c.h.b16 %v450
    %v1664 = vunpack.c.l.b16 %v451
    %v1665 = vunpack.c.h.b16 %v451
    %v1666 = vunpack.c.l.b16 %v452
    %v1667 = vunpack.c.h.b16 %v452
    %v1668 = vunpack.c.l.b16 %v453
    %v1669 = vunpack.c.h.b16 %v453
    %v1670 = vunpack.c.l.b16 %v454
    %v1671 = vunpack.c.h.b16 %v454
    %v1672 = vunpack.c.l.b16 %v455
    %v1673 = vunpack.c.h.b16 %v455
    %v1674 = vunpack.c.l.b16 %v456
    %v1675 = vunpack.c.h.b16 %v456
    %v1676 = vunpack.c.l.b16 %v457
    %v1677 = vunpack.c.h.b16 %v457
    %v1678 = vunpack.c.l.b16 %v458
    %v1679 = vunpack.c.h.b16 %v458
    %v1680 = vunpack.c.l.b16 %v459
    %v1681 = vunpack.c.h.b16 %v459
    %v1682 = vunpack.c.l.b16 %v460
    %v1683 = vunpack.c.h.b16 %v460
    %v1684 = vunpack.c.l.b16 %v461
    %v1685 = vunpack.c.h.b16 %v461
    %v1686 = vunpack.c.l.b16 %v462
    %v1687 = vunpack.c.h.b16 %v462
    %v1688 = vunpack.c.l.b16 %v463
    %v1689 = vunpack.c.h.b16 %v463
    %v1690 = vunpack.c.l.b16 %v464
    %v1691 = vunpack.c.h.b16 %v464
    %v1692 = vunpack.c.l.b16 %v465
    %v1693 = vunpack.c.h.b16 %v465
    %v1694 = vunpack.c.l.b16 %v466
    %v1695 = vunpack.c.h.b16 %v466
    %v1696 = vunpack.c.l.b16 %v467
    %v1697 = vunpack.c.h.b16 %v467
    %v1698 = vunpack.c.l.b16 %v468
    %v1699 = vunpack.c.h.b16 %v468
    %v1700 = vunpack.c.l.b16 %v469
    %v1701 = vunpack.c.h.b16 %v469
    %v1702 = vunpack.c.l.b16 %v470
    %v1703 = vunpack.c.h.b16 %v470
    %v1704 = vunpack.c.l.b16 %v471
    %v1705 = vunpack.c.h.b16 %v471
    %v1706 = vunpack.c.l.b16 %v472
    %v1707 = vunpack.c.h.b16 %v472
    %v1708 = vunpack.c.l.b16 %v473
    %v1709 = vunpack.c.h.b16 %v473
    %v1710 = vunpack.c.l.b16 %v474
    %v1711 = vunpack.c.h.b16 %v474
    %v1712 = vunpack.c.l.b16 %v475
    %v1713 = vunpack.c.h.b16 %v475
    %v1714 = vunpack.c.l.b16 %v476
    %v1715 = vunpack.c.h.b16 %v476
    %v1716 = vunpack.c.l.b16 %v477
    %v1717 = vunpack.c.h.b16 %v477
    %v1718 = vunpack.c.l.b16 %v478
    %v1719 = vunpack.c.h.b16 %v478
    %v1720 = vunpack.c.l.b16 %v479
    %v1721 = vunpack.c.h.b16 %v479
    %v1722 = vpack.c.b16 %v912, %v894
    %v1723 = vpack.c.b16 %v913, %v895
    %v1724 = vpack.c.b16 %v914, %v896
    %v1725 = vpack.c.b16 %v915, %v897
    %v1726 = vpack.c.b16 %v916, %v898
    %v1727 = vpack.c.b16 %v917, %v899
    %v1728 = vpack.c.b16 %v918, %v900
    %v1729 = vpack.c.b16 %v919, %v901
    %v1730 = vpack.c.b16 %v920, %v902
    %v1731 = vpack.c.b16 %v921, %v903
    %v1732 = vpack.c.b16 %v922, %v904
    %v1733 = vpack.c.b16 %v923, %v905
    %v1734 = vpack.c.b16 %v924, %v906
    %v1735 = vpack.c.b16 %v925, %v907
    %v1736 = vpack.c.b16 %v926, %v908
    %v1737 = vpack.c.b16 %v927, %v909
    %v1738 = vpack.c.b16 %v928, %v910
    %v1739 = vpack.c.b16 %v929, %v911
    %v1740 = vpack.c.b16 %v948, %v930
    %v1741 = vpack.c.b16 %v949, %v931
    %v1742 = vpack.c.b16 %v950, %v932
    %v1743 = vpack.c.b16 %v951, %v933
    %v1744 = vpack.c.b16 %v952, %v934
    %v1745 = vpack.c.b16 %v953, %v935
    %v1746 = vpack.c.b16 %v954, %v936
    %v1747 = vpack.c.b16 %v955, %v937
    %v1748 = vpack.c.b16 %v956, %v938
    %v1749 = vpack.c.b16 %v957, %v939
    %v1750 = vpack.c.b16 %v958, %v940
    %v1751 = vpack.c.b16 %v959, %v941
    %v1752 = vpack.c.b16 %v960, %v942
    %v1753 = vpack.c.b16 %v961, %v943
    %v1754 = vpack.c.b16 %v962, %v944
    %v1755 = vpack.c.b16 %v963, %v945
    %v1756 = vpack.c.b16 %v964, %v946
    %v1757 = vpack.c.b16 %v965, %v947
    %v1758 = vpack.c.b16 %v984, %v966
    %v1759 = vpack.c.b16 %v985, %v967
    %v1760 = vpack.c.b16 %v986, %v968
    %v1761 = vpack.c.b16 %v987, %v969
    %v1762 = vpack.c.b16 %v988, %v970
    %v1763 = vpack.c.b16 %v989, %v971
    %v1764 = vpack.c.b16 %v990, %v972
    %v1765 = vpack.c.b16 %v991, %v973
    %v1766 = vpack.c.b16 %v992, %v974
    %v1767 = vpack.c.b16 %v993, %v975
    %v1768 = vpack.c.b16 %v994, %v976
    %v1769 = vpack.c.b16 %v995, %v977
    %v1770 = vpack.c.b16 %v996, %v978
    %v1771 = vpack.c.b16 %v997, %v979
    %v1772 = vpack.c.b16 %v998, %v980
    %v1773 = vpack.c.b16 %v999, %v981
    %v1774 = vpack.c.b16 %v1000, %v982
    %v1775 = vpack.c.b16 %v1001, %v983
    %v1776 = vpack.c.b16 %v1020, %v1002
    %v1777 = vpack.c.b16 %v1021, %v1003
    %v1778 = vpack.c.b16 %v1022, %v1004
    %v1779 = vpack.c.b16 %v1023, %v1005
    %v1780 = vpack.c.b16 %v1024, %v1006
    %v1781 = vpack.c.b16 %v1025, %v1007
    %v1782 = vpack.c.b16 %v1026, %v1008
    %v1783 = vpack.c.b16 %v1027, %v1009
    %v1784 = vpack.c.b16 %v1028, %v1010
    %v1785 = vpack.c.b16 %v1029, %v1011
    %v1786 = vpack.c.b16 %v1030, %v1012
    %v1787 = vpack.c.b16 %v1031, %v1013
    %v1788 = vpack.c.b16 %v1032, %v1014
    %v1789 = vpack.c.b16 %v1033, %v1015
    %v1790 = vpack.c.b16 %v1034, %v1016
    %v1791 = vpack.c.b16 %v1035, %v1017
    %v1792 = vpack.c.b16 %v1036, %v1018
    %v1793 = vpack.c.b16 %v1037, %v1019
    %v1794 = vpack.c.b16 %v1056, %v1038
    %v1795 = vpack.c.b16 %v1057, %v1039
    %v1796 = vpack.c.b16 %v1058, %v1040
    %v1797 = vpack.c.b16 %v1059, %v1041
    %v1798 = vpack.c.b16 %v1060, %v1042
    %v1799 = vpack.c.b16 %v1061, %v1043
    %v1800 = vpack.c.b16 %v1062, %v1044
    %v1801 = vpack.c.b16 %v1063, %v1045
    %v1802 = vpack.c.b16 %v1064, %v1046
    %v1803 = vpack.c.b16 %v1065, %v1047
    %v1804 = vpack.c.b16 %v1066, %v1048
    %v1805 = vpack.c.b16 %v1067, %v1049
    %v1806 = vpack.c.b16 %v1068, %v1050
    %v1807 = vpack.c.b16 %v1069, %v1051
    %v1808 = vpack.c.b16 %v1070, %v1052
    %v1809 = vpack.c.b16 %v1071, %v1053
    %v1810 = vpack.c.b16 %v1072, %v1054
    %v1811 = vpack.c.b16 %v1073, %v1055
    %v1812 = vpack.c.b16 %v1092, %v1074
    %v1813 = vpack.c.b16 %v1093, %v1075
    %v1814 = vpack.c.b16 %v1094, %v1076
    %v1815 = vpack.c.b16 %v1095, %v1077
    %v1816 = vpack.c.b16 %v1096, %v1078
    %v1817 = vpack.c.b16 %v1097, %v1079
    %v1818 = vpack.c.b16 %v1098, %v1080
    %v1819 = vpack.c.b16 %v1099, %v1081
    %v1820 = vpack.c.b16 %v1100, %v1082
    %v1821 = vpack.c.b16 %v1101, %v1083
    %v1822 = vpack.c.b16 %v1102, %v1084
    %v1823 = vpack.c.b16 %v1103, %v1085
    %v1824 = vpack.c.b16 %v1104, %v1086
    %v1825 = vpack.c.b16 %v1105, %v1087
    %v1826 = vpack.c.b16 %v1106, %v1088
    %v1827 = vpack.c.b16 %v1107, %v1089
    %v1828 = vpack.c.b16 %v1108, %v1090
    %v1829 = vpack.c.b16 %v1109, %v1091
    %v1830 = vpack.c.b16 %v1128, %v1110
    %v1831 = vpack.c.b16 %v1129, %v1111
    %v1832 = vpack.c.b16 %v1130, %v1112
    %v1833 = vpack.c.b16 %v1131, %v1113
    %v1834 = vpack.c.b16 %v1132, %v1114
    %v1835 = vpack.c.b16 %v1133, %v1115
    %v1836 = vpack.c.b16 %v1134, %v1116
    %v1837 = vpack.c.b16 %v1135, %v1117
    %v1838 = vpack.c.b16 %v1136, %v1118
    %v1839 = vpack.c.b16 %v1137, %v1119
    %v1840 = vpack.c.b16 %v1138, %v1120
    %v1841 = vpack.c.b16 %v1139, %v1121
    %v1842 = vpack.c.b16 %v1140, %v1122
    %v1843 = vpack.c.b16 %v1141, %v1123
    %v1844 = vpack.c.b16 %v1142, %v1124
    %v1845 = vpack.c.b16 %v1143, %v1125
    %v1846 = vpack.c.b16 %v1144, %v1126
    %v1847 = vpack.c.b16 %v1145, %v1127
    %v1848 = vpack.c.b16 %v1164, %v1146
    %v1849 = vpack.c.b16 %v1165, %v1147
    %v1850 = vpack.c.b16 %v1166, %v1148
    %v1851 = vpack.c.b16 %v1167, %v1149
    %v1852 = vpack.c.b16 %v1168, %v1150
    %v1853 = vpack.c.b16 %v1169, %v1151
    %v1854 = vpack.c.b16 %v1170, %v1152
    %v1855 = vpack.c.b16 %v1171, %v1153
    %v1856 = vpack.c.b16 %v1172, %v1154
    %v1857 = vpack.c.b16 %v1173, %v1155
    %v1858 = vpack.c.b16 %v1174, %v1156
    %v1859 = vpack.c.b16 %v1175, %v1157
    %v1860 = vpack.c.b16 %v1176, %v1158
    %v1861 = vpack.c.b16 %v1177, %v1159
    %v1862 = vpack.c.b16 %v1178, %v1160
    %v1863 = vpack.c.b16 %v1179, %v1161
    %v1864 = vpack.c.b16 %v1180, %v1162
    %v1865 = vpack.c.b16 %v1181, %v1163
    %v1866 = vpack.c.b16 %v1200, %v1182
    %v1867 = vpack.c.b16 %v1201, %v1183
    %v1868 = vpack.c.b16 %v1202, %v1184
    %v1869 = vpack.c.b16 %v1203, %v1185
    %v1870 = vpack.c.b16 %v1204, %v1186
    %v1871 = vpack.c.b16 %v1205, %v1187
    %v1872 = vpack.c.b16 %v1206, %v1188
    %v1873 = vpack.c.b16 %v1207, %v1189
    %v1874 = vpack.c.b16 %v1208, %v1190
    %v1875 = vpack.c.b16 %v1209, %v1191
    %v1876 = vpack.c.b16 %v1210, %v1192
    %v1877 = vpack.c.b16 %v1211, %v1193
    %v1878 = vpack.c.b16 %v1212, %v1194
    %v1879 = vpack.c.b16 %v1213, %v1195
    %v1880 = vpack.c.b16 %v1214, %v1196
    %v1881 = vpack.c.b16 %v1215, %v1197
    %v1882 = vpack.c.b16 %v1216, %v1198
    %v1883 = vpack.c.b16 %v1217, %v1199
    %v1884 = vpack.c.b16 %v1236, %v1218
    %v1885 = vpack.c.b16 %v1237, %v1219
    %v1886 = vpack.c.b16 %v1238, %v1220
    %v1887 = vpack.c.b16 %v1239, %v1221
    %v1888 = vpack.c.b16 %v1240, %v1222
    %v1889 = vpack.c.b16 %v1241, %v1223
    %v1890 = vpack.c.b16 %v1242, %v1224
    %v1891 = vpack.c.b16 %v1243, %v1225
    %v1892 = vpack.c.b16 %v1244, %v1226
    %v1893 = vpack.c.b16 %v1245, %v1227
    %v1894 = vpack.c.b16 %v1246, %v1228
    %v1895 = vpack.c.b16 %v1247, %v1229
    %v1896 = vpack.c.b16 %v1248, %v1230
    %v1897 = vpack.c.b16 %v1249, %v1231
    %v1898 = vpack.c.b16 %v1250, %v1232
    %v1899 = vpack.c.b16 %v1251, %v1233
    %v1900 = vpack.c.b16 %v1252, %v1234
    %v1901 = vpack.c.b16 %v1253, %v1235
    %v1902 = vpack.c.b16 %v1272, %v1254
    %v1903 = vpack.c.b16 %v1273, %v1255
    %v1904 = vpack.c.b16 %v1274, %v1256
    %v1905 = vpack.c.b16 %v1275, %v1257
    %v1906 = vpack.c.b16 %v1276, %v1258
    %v1907 = vpack.c.b16 %v1277, %v1259
    %v1908 = vpack.c.b16 %v1278, %v1260
    %v1909 = vpack.c.b16 %v1279, %v1261
    %v1910 = vpack.c.b16 %v1280, %v1262
    %v1911 = vpack.c.b16 %v1281, %v1263
    %v1912 = vpack.c.b16 %v1282, %v1264
    %v1913 = vpack.c.b16 %v1283, %v1265
    %v1914 = vpack.c.b16 %v1284, %v1266
    %v1915 = vpack.c.b16 %v1285, %v1267
    %v1916 = vpack.c.b16 %v1286, %v1268
    %v1917 = vpack.c.b16 %v1287, %v1269
    %v1918 = vpack.c.b16 %v1288, %v1270
    %v1919 = vpack.c.b16 %v1289, %v1271
    %v1920 = vpack.c.b16 %v1308, %v1290
    %v1921 = vpack.c.b16 %v1309, %v1291
    %v1922 = vpack.c.b16 %v1310, %v1292
    %v1923 = vpack.c.b16 %v1311, %v1293
    %v1924 = vpack.c.b16 %v1312, %v1294
    %v1925 = vpack.c.b16 %v1313, %v1295
    %v1926 = vpack.c.b16 %v1314, %v1296
    %v1927 = vpack.c.b16 %v1315, %v1297
    %v1928 = vpack.c.b16 %v1316, %v1298
    %v1929 = vpack.c.b16 %v1317, %v1299
    %v1930 = vpack.c.b16 %v1318, %v1300
    %v1931 = vpack.c.b16 %v1319, %v1301
    %v1932 = vpack.c.b16 %v1320, %v1302
    %v1933 = vpack.c.b16 %v1321, %v1303
    %v1934 = vpack.c.b16 %v1322, %v1304
    %v1935 = vpack.c.b16 %v1323, %v1305
    %v1936 = vpack.c.b16 %v1324, %v1306
    %v1937 = vpack.c.b16 %v1325, %v1307
    %v1938 = vpack.c.b16 %v1344, %v1326
    %v1939 = vpack.c.b16 %v1345, %v1327
    %v1940 = vpack.c.b16 %v1346, %v1328
    %v1941 = vpack.c.b16 %v1347, %v1329
    %v1942 = vpack.c.b16 %v1348, %v1330
    %v1943 = vpack.c.b16 %v1349, %v1331
    %v1944 = vpack.c.b16 %v1350, %v1332
    %v1945 = vpack.c.b16 %v1351, %v1333
    %v1946 = vpack.c.b16 %v1352, %v1334
    %v1947 = vpack.c.b16 %v1353, %v1335
    %v1948 = vpack.c.b16 %v1354, %v1336
    %v1949 = vpack.c.b16 %v1355, %v1337
    %v1950 = vpack.c.b16 %v1356, %v1338
    %v1951 = vpack.c.b16 %v1357, %v1339
    %v1952 = vpack.c.b16 %v1358, %v1340
    %v1953 = vpack.c.b16 %v1359, %v1341
    %v1954 = vpack.c.b16 %v1360, %v1342
    %v1955 = vpack.c.b16 %v1361, %v1343
    %v1956 = vpack.c.b16 %v1380, %v1362
    %v1957 = vpack.c.b16 %v1381, %v1363
    %v1958 = vpack.c.b16 %v1382, %v1364
    %v1959 = vpack.c.b16 %v1383, %v1365
    %v1960 = vpack.c.b16 %v1384, %v1366
    %v1961 = vpack.c.b16 %v1385, %v1367
    %v1962 = vpack.c.b16 %v1386, %v1368
    %v1963 = vpack.c.b16 %v1387, %v1369
    %v1964 = vpack.c.b16 %v1388, %v1370
    %v1965 = vpack.c.b16 %v1389, %v1371
    %v1966 = vpack.c.b16 %v1390, %v1372
    %v1967 = vpack.c.b16 %v1391, %v1373
    %v1968 = vpack.c.b16 %v1392, %v1374
    %v1969 = vpack.c.b16 %v1393, %v1375
    %v1970 = vpack.c.b16 %v1394, %v1376
    %v1971 = vpack.c.b16 %v1395, %v1377
    %v1972 = vpack.c.b16 %v1396, %v1378
    %v1973 = vpack.c.b16 %v1397, %v1379
    %v1974 = vpack.c.b16 %v1416, %v1398
    %v1975 = vpack.c.b16 %v1417, %v1399
    %v1976 = vpack.c.b16 %v1418, %v1400
    %v1977 = vpack.c.b16 %v1419, %v1401
    %v1978 = vpack.c.b16 %v1420, %v1402
    %v1979 = vpack.c.b16 %v1421, %v1403
    %v1980 = vpack.c.b16 %v1422, %v1404
    %v1981 = vpack.c.b16 %v1423, %v1405
    %v1982 = vpack.c.b16 %v1424, %v1406
    %v1983 = vpack.c.b16 %v1425, %v1407
    %v1984 = vpack.c.b16 %v1426, %v1408
    %v1985 = vpack.c.b16 %v1427, %v1409
    %v1986 = vpack.c.b16 %v1428, %v1410
    %v1987 = vpack.c.b16 %v1429, %v1411
    %v1988 = vpack.c.b16 %v1430, %v1412
    %v1989 = vpack.c.b16 %v1431, %v1413
    %v1990 = vpack.c.b16 %v1432, %v1414
    %v1991 = vpack.c.b16 %v1433, %v1415
    %v1992 = vpack.c.b16 %v1452, %v1434
    %v1993 = vpack.c.b16 %v1453, %v1435
    %v1994 = vpack.c.b16 %v1454, %v1436
    %v1995 = vpack.c.b16 %v1455, %v1437
    %v1996 = vpack.c.b16 %v1456, %v1438
    %v1997 = vpack.c.b16 %v1457, %v1439
    %v1998 = vpack.c.b16 %v1458, %v1440
    %v1999 = vpack.c.b16 %v1459, %v1441
    %v2000 = vpack.c.b16 %v1460, %v1442
    %v2001 = vpack.c.b16 %v1461, %v1443
    %v2002 = vpack.c.b16 %v1462, %v1444
    %v2003 = vpack.c.b16 %v1463, %v1445
    %v2004 = vpack.c.b16 %v1464, %v1446
    %v2005 = vpack.c.b16 %v1465, %v1447
    %v2006 = vpack.c.b16 %v1466, %v1448
    %v2007 = vpack.c.b16 %v1467, %v1449
    %v2008 = vpack.c.b16 %v1468, %v1450
    %v2009 = vpack.c.b16 %v1469, %v1451
    %v2010 = vpack.c.b16 %v1488, %v1470
    %v2011 = vpack.c.b16 %v1489, %v1471
    %v2012 = vpack.c.b16 %v1490, %v1472
    %v2013 = vpack.c.b16 %v1491, %v1473
    %v2014 = vpack.c.b16 %v1492, %v1474
    %v2015 = vpack.c.b16 %v1493, %v1475
    %v2016 = vpack.c.b16 %v1494, %v1476
    %v2017 = vpack.c.b16 %v1495, %v1477
    %v2018 = vpack.c.b16 %v1496, %v1478
    %v2019 = vpack.c.b16 %v1497, %v1479
    %v2020 = vpack.c.b16 %v1498, %v1480
    %v2021 = vpack.c.b16 %v1499, %v1481
    %v2022 = vpack.c.b16 %v1500, %v1482
    %v2023 = vpack.c.b16 %v1501, %v1483
    %v2024 = vpack.c.b16 %v1502, %v1484
    %v2025 = vpack.c.b16 %v1503, %v1485
    %v2026 = vpack.c.b16 %v1504, %v1486
    %v2027 = vpack.c.b16 %v1505, %v1487
    %v2028 = vpack.c.b16 %v1524, %v1506
    %v2029 = vpack.c.b16 %v1525, %v1507
    %v2030 = vpack.c.b16 %v1526, %v1508
    %v2031 = vpack.c.b16 %v1527, %v1509
    %v2032 = vpack.c.b16 %v1528, %v1510
    %v2033 = vpack.c.b16 %v1529, %v1511
    %v2034 = vpack.c.b16 %v1530, %v1512
    %v2035 = vpack.c.b16 %v1531, %v1513
    %v2036 = vpack.c.b16 %v1532, %v1514
    %v2037 = vpack.c.b16 %v1533, %v1515
    %v2038 = vpack.c.b16 %v1534, %v1516
    %v2039 = vpack.c.b16 %v1535, %v1517
    %v2040 = vpack.c.b16 %v1536, %v1518
    %v2041 = vpack.c.b16 %v1537, %v1519
    %v2042 = vpack.c.b16 %v1538, %v1520
    %v2043 = vpack.c.b16 %v1539, %v1521
    %v2044 = vpack.c.b16 %v1540, %v1522
    %v2045 = vpack.c.b16 %v1541, %v1523
    %v2046 = vpack.c.b16 %v1560, %v1542
    %v2047 = vpack.c.b16 %v1561, %v1543
    %v2048 = vpack.c.b16 %v1562, %v1544
    %v2049 = vpack.c.b16 %v1563, %v1545
    %v2050 = vpack.c.b16 %v1564, %v1546
    %v2051 = vpack.c.b16 %v1565, %v1547
    %v2052 = vpack.c.b16 %v1566, %v1548
    %v2053 = vpack.c.b16 %v1567, %v1549
    %v2054 = vpack.c.b16 %v1568, %v1550
    %v2055 = vpack.c.b16 %v1569, %v1551
    %v2056 = vpack.c.b16 %v1570, %v1552
    %v2057 = vpack.c.b16 %v1571, %v1553
    %v2058 = vpack.c.b16 %v1572, %v1554
    %v2059 = vpack.c.b16 %v1573, %v1555
    %v2060 = vpack.c.b16 %v1574, %v1556
    %v2061 = vpack.c.b16 %v1575, %v1557
    %v2062 = vpack.c.b16 %v1576, %v1558
    %v2063 = vpack.c.b16 %v1577, %v1559
    %v2064 = vpack.c.b16 %v1596, %v1578
    %v2065 = vpack.c.b16 %v1597, %v1579
    %v2066 = vpack.c.b16 %v1598, %v1580
    %v2067 = vpack.c.b16 %v1599, %v1581
    %v2068 = vpack.c.b16 %v1600, %v1582
    %v2069 = vpack.c.b16 %v1601, %v1583
    %v2070 = vpack.c.b16 %v1602, %v1584
    %v2071 = vpack.c.b16 %v1603, %v1585
    %v2072 = vpack.c.b16 %v1604, %v1586
    %v2073 = vpack.c.b16 %v1605, %v1587
    %v2074 = vpack.c.b16 %v1606, %v1588
    %v2075 = vpack.c.b16 %v1607, %v1589
    %v2076 = vpack.c.b16 %v1608, %v1590
    %v2077 = vpack.c.b16 %v1609, %v1591
    %v2078 = vpack.c.b16 %v1610, %v1592
    %v2079 = vpack.c.b16 %v1611, %v1593
    %v2080 = vpack.c.b16 %v1612, %v1594
    %v2081 = vpack.c.b16 %v1613, %v1595
    %v2082 = vpack.c.b16 %v1632, %v1614
    %v2083 = vpack.c.b16 %v1633, %v1615
    %v2084 = vpack.c.b16 %v1634, %v1616
    %v2085 = vpack.c.b16 %v1635, %v1617
    %v2086 = vpack.c.b16 %v1636, %v1618
    %v2087 = vpack.c.b16 %v1637, %v1619
    %v2088 = vpack.c.b16 %v1638, %v1620
    %v2089 = vpack.c.b16 %v1639, %v1621
    %v2090 = vpack.c.b16 %v1640, %v1622
    %v2091 = vpack.c.b16 %v1641, %v1623
    %v2092 = vpack.c.b16 %v1642, %v1624
    %v2093 = vpack.c.b16 %v1643, %v1625
    %v2094 = vpack.c.b16 %v1644, %v1626
    %v2095 = vpack.c.b16 %v1645, %v1627
    %v2096 = vpack.c.b16 %v1646, %v1628
    %v2097 = vpack.c.b16 %v1647, %v1629
    %v2098 = vpack.c.b16 %v1648, %v1630
    %v2099 = vpack.c.b16 %v1649, %v1631
    %v2100 = vpack.c.b16 %v1668, %v1650
    %v2101 = vpack.c.b16 %v1669, %v1651
    %v2102 = vpack.c.b16 %v1670, %v1652
    %v2103 = vpack.c.b16 %v1671, %v1653
    %v2104 = vpack.c.b16 %v1672, %v1654
    %v2105 = vpack.c.b16 %v1673, %v1655
    %v2106 = vpack.c.b16 %v1674, %v1656
    %v2107 = vpack.c.b16 %v1675, %v1657
    %v2108 = vpack.c.b16 %v1676, %v1658
    %v2109 = vpack.c.b16 %v1677, %v1659
    %v2110 = vpack.c.b16 %v1678, %v1660
    %v2111 = vpack.c.b16 %v1679, %v1661
    %v2112 = vpack.c.b16 %v1680, %v1662
    %v2113 = vpack.c.b16 %v1681, %v1663
    %v2114 = vpack.c.b16 %v1682, %v1664
    %v2115 = vpack.c.b16 %v1683, %v1665
    %v2116 = vpack.c.b16 %v1684, %v1666
    %v2117 = vpack.c.b16 %v1685, %v1667
    %v2118 = vpack.c.b16 %v1704, %v1686
    %v2119 = vpack.c.b16 %v1705, %v1687
    %v2120 = vpack.c.b16 %v1706, %v1688
    %v2121 = vpack.c.b16 %v1707, %v1689
    %v2122 = vpack.c.b16 %v1708, %v1690
    %v2123 = vpack.c.b16 %v1709, %v1691
    %v2124 = vpack.c.b16 %v1710, %v1692
    %v2125 = vpack.c.b16 %v1711, %v1693
    %v2126 = vpack.c.b16 %v1712, %v1694
    %v2127 = vpack.c.b16 %v1713, %v1695
    %v2128 = vpack.c.b16 %v1714, %v1696
    %v2129 = vpack.c.b16 %v1715, %v1697
    %v2130 = vpack.c.b16 %v1716, %v1698
    %v2131 = vpack.c.b16 %v1717, %v1699
    %v2132 = vpack.c.b16 %v1718, %v1700
    %v2133 = vpack.c.b16 %v1719, %v1701
    %v2134 = vpack.c.b16 %v1720, %v1702
    %v2135 = vpack.c.b16 %v1721, %v1703
    %vm2532 = vcmask 875520
    %v2534 = vsel %vm2532, %v65, 0
    %vm2536 = vcmask 1044480
    %vm2537 = vcmask 1045504
    %v2538 = vsel %vm2536, 4294967295, 65535
    %v2539 = vsel %vm2537, %v2538, 0
    %v2541 = vand.u32 %v2118, %v2539
    %v2544 = vand.u32 %v2119, %v2539
    %v2547 = vand.u32 %v2120, %v2539
    %v2550 = vand.u32 %v2121, %v2539
    %v2553 = vand.u32 %v2122, %v2539
    %v2556 = vand.u32 %v2123, %v2539
    %v2559 = vand.u32 %v2124, %v2539
    %v2562 = vand.u32 %v2125, %v2539
    %v2565 = vand.u32 %v2126, %v2539
    %v2568 = vand.u32 %v2127, %v2539
    %v2571 = vand.u32 %v2128, %v2539
    %v2574 = vand.u32 %v2129, %v2539
    %v2577 = vand.u32 %v2130, %v2539
    %v2580 = vand.u32 %v2131, %v2539
    %v2583 = vand.u32 %v2132, %v2539
    %v2586 = vand.u32 %v2133, %v2539
    %v2589 = vand.u32 %v2134, %v2539
    %v2592 = vand.u32 %v2135, %v2539
    %2594 = vmatprep.subr.bf16.mxu0 %v1723
    %2595 = vmatpush1.bf16.msra.mxu0 %v1722
    %2596 = vmatprep.subr.bf16.mxu0 %v1741
    %2597 = vmatpush1.bf16.msra.mxu0 %v1740
    %2598 = vmatprep.subr.bf16.mxu0 %v1759
    %2599 = vmatpush1.bf16.msra.mxu0 %v1758
    %2600 = vmatprep.subr.bf16.mxu0 %v1777
    %2601 = vmatpush1.bf16.msra.mxu0 %v1776
    %2602 = vmatprep.subr.bf16.mxu0 %v1795
    %2603 = vmatpush1.bf16.msra.mxu0 %v1794
    %2604 = vmatprep.subr.bf16.mxu0 %v1813
    %2605 = vmatpush1.bf16.msra.mxu0 %v1812
    %2606 = vmatprep.subr.bf16.mxu0 %v1831
    %2607 = vmatpush1.bf16.msra.mxu0 %v1830
    %2608 = vmatprep.subr.bf16.mxu0 %v1849
    %2609 = vmatpush1.bf16.msra.mxu0 %v1848
    %2610 = vmatprep.subr.bf16.mxu0 %v1867
    %2611 = vmatpush1.bf16.msra.mxu0 %v1866
    %2612 = vmatprep.subr.bf16.mxu0 %v1885
    %2613 = vmatpush1.bf16.msra.mxu0 %v1884
    %2614 = vmatprep.subr.bf16.mxu0 %v1903
    %2615 = vmatpush1.bf16.msra.mxu0 %v1902
    %2616 = vmatprep.subr.bf16.mxu0 %v1921
    %2617 = vmatpush1.bf16.msra.mxu0 %v1920
    %2618 = vmatprep.subr.bf16.mxu0 %v1939
    %2619 = vmatpush1.bf16.msra.mxu0 %v1938
    %2620 = vmatprep.subr.bf16.mxu0 %v1957
    %2621 = vmatpush1.bf16.msra.mxu0 %v1956
    %2622 = vmatprep.subr.bf16.mxu0 %v1975
    %2623 = vmatpush1.bf16.msra.mxu0 %v1974
    %2624 = vmatprep.subr.bf16.mxu0 %v1993
    %2625 = vmatpush1.bf16.msra.mxu0 %v1992
    %2626 = vmatprep.mubr.bf16.mxu0 %v64
    %2627 = vmatmul.mubr.bf16.gmra.mrb[0].mxu0 %v63
    %v2628 = vpop.f32.mrb[0].mxu0
    %v2629 = vadd.f32 0.0, %v2628
    %v2630 = vpop.f32.mrb[0].mxu0
    %v2631 = vadd.f32 0.0, %v2630
    %v2632 = vpop.f32.mrb[0].mxu0
    %v2633 = vpop.f32.mrb[0].mxu0
    %2634 = vdwg.mxu0
    %2635 = vmatprep.subr.bf16.mxu0 %v2011
    %2636 = vmatpush1.bf16.msra.mxu0 %v2010
    %2637 = vmatprep.subr.bf16.mxu0 %v2029
    %2638 = vmatpush1.bf16.msra.mxu0 %v2028
    %2639 = vmatprep.subr.bf16.mxu0 %v2047
    %2640 = vmatpush1.bf16.msra.mxu0 %v2046
    %2641 = vmatprep.subr.bf16.mxu0 %v2065
    %2642 = vmatpush1.bf16.msra.mxu0 %v2064
    %2643 = vmatprep.subr.bf16.mxu0 %v2083
    %2644 = vmatpush1.bf16.msra.mxu0 %v2082
    %2645 = vmatprep.subr.bf16.mxu0 %v2101
    %2646 = vmatpush1.bf16.msra.mxu0 %v2100
    %2647 = vmatprep.subr.bf16.mxu0 %v2544
    %2648 = vmatpush1.bf16.msra.mxu0 %v2541
    %2649 = vmatprep.subr.bf16.mxu0 0
    %2650 = vmatpush1.bf16.msra.mxu0 0
    %2651 = vmatprep.subr.bf16.mxu0 0
    %2652 = vmatpush1.bf16.msra.mxu0 0
    %2653 = vmatprep.subr.bf16.mxu0 0
    %2654 = vmatpush1.bf16.msra.mxu0 0
    %2655 = vmatprep.subr.bf16.mxu0 0
    %2656 = vmatpush1.bf16.msra.mxu0 0
    %2657 = vmatprep.subr.bf16.mxu0 0
    %2658 = vmatpush1.bf16.msra.mxu0 0
    %2659 = vmatprep.subr.bf16.mxu0 0
    %2660 = vmatpush1.bf16.msra.mxu0 0
    %2661 = vmatprep.subr.bf16.mxu0 0
    %2662 = vmatpush1.bf16.msra.mxu0 0
    %2663 = vmatprep.subr.bf16.mxu0 0
    %2664 = vmatpush1.bf16.msra.mxu0 0
    %2665 = vmatprep.subr.bf16.mxu0 0
    %2666 = vmatpush1.bf16.msra.mxu0 0
    %2667 = vmatprep.mubr.bf16.mxu0 0
    %2668 = vmatmul.mubr.bf16.gmra.mrb[0].mxu0 %v2534
    %v2669 = vpop.f32.mrb[0].mxu0
    %v2670 = vadd.f32 %v2629, %v2669
    %v2671 = vpop.f32.mrb[0].mxu0
    %v2672 = vadd.f32 %v2631, %v2671
    %v2673 = vpop.f32.mrb[0].mxu0
    %v2674 = vpop.f32.mrb[0].mxu0
    %2675 = vdwg.mxu0
    %2676 = vmatprep.subr.bf16.mxu0 %v1725
    %2677 = vmatpush1.bf16.msra.mxu0 %v1724
    %2678 = vmatprep.subr.bf16.mxu0 %v1743
    %2679 = vmatpush1.bf16.msra.mxu0 %v1742
    %2680 = vmatprep.subr.bf16.mxu0 %v1761
    %2681 = vmatpush1.bf16.msra.mxu0 %v1760
    %2682 = vmatprep.subr.bf16.mxu0 %v1779
    %2683 = vmatpush1.bf16.msra.mxu0 %v1778
    %2684 = vmatprep.subr.bf16.mxu0 %v1797
    %2685 = vmatpush1.bf16.msra.mxu0 %v1796
    %2686 = vmatprep.subr.bf16.mxu0 %v1815
    %2687 = vmatpush1.bf16.msra.mxu0 %v1814
    %2688 = vmatprep.subr.bf16.mxu0 %v1833
    %2689 = vmatpush1.bf16.msra.mxu0 %v1832
    %2690 = vmatprep.subr.bf16.mxu0 %v1851
    %2691 = vmatpush1.bf16.msra.mxu0 %v1850
    %2692 = vmatprep.subr.bf16.mxu0 %v1869
    %2693 = vmatpush1.bf16.msra.mxu0 %v1868
    %2694 = vmatprep.subr.bf16.mxu0 %v1887
    %2695 = vmatpush1.bf16.msra.mxu0 %v1886
    %2696 = vmatprep.subr.bf16.mxu0 %v1905
    %2697 = vmatpush1.bf16.msra.mxu0 %v1904
    %2698 = vmatprep.subr.bf16.mxu0 %v1923
    %2699 = vmatpush1.bf16.msra.mxu0 %v1922
    %2700 = vmatprep.subr.bf16.mxu0 %v1941
    %2701 = vmatpush1.bf16.msra.mxu0 %v1940
    %2702 = vmatprep.subr.bf16.mxu0 %v1959
    %2703 = vmatpush1.bf16.msra.mxu0 %v1958
    %2704 = vmatprep.subr.bf16.mxu0 %v1977
    %2705 = vmatpush1.bf16.msra.mxu0 %v1976
    %2706 = vmatprep.subr.bf16.mxu0 %v1995
    %2707 = vmatpush1.bf16.msra.mxu0 %v1994
    %2708 = vmatprep.mubr.bf16.mxu0 %v64
    %2709 = vmatmul.mubr.bf16.gmra.mrb[0].mxu0 %v63
    %v2710 = vpop.f32.mrb[0].mxu0
    %v2711 = vadd.f32 0.0, %v2710
    %v2712 = vpop.f32.mrb[0].mxu0
    %v2713 = vadd.f32 0.0, %v2712
    %v2714 = vpop.f32.mrb[0].mxu0
    %v2715 = vpop.f32.mrb[0].mxu0
    %2716 = vdwg.mxu0
    %2717 = vmatprep.subr.bf16.mxu0 %v2013
    %2718 = vmatpush1.bf16.msra.mxu0 %v2012
    %2719 = vmatprep.subr.bf16.mxu0 %v2031
    %2720 = vmatpush1.bf16.msra.mxu0 %v2030
    %2721 = vmatprep.subr.bf16.mxu0 %v2049
    %2722 = vmatpush1.bf16.msra.mxu0 %v2048
    %2723 = vmatprep.subr.bf16.mxu0 %v2067
    %2724 = vmatpush1.bf16.msra.mxu0 %v2066
    %2725 = vmatprep.subr.bf16.mxu0 %v2085
    %2726 = vmatpush1.bf16.msra.mxu0 %v2084
    %2727 = vmatprep.subr.bf16.mxu0 %v2103
    %2728 = vmatpush1.bf16.msra.mxu0 %v2102
    %2729 = vmatprep.subr.bf16.mxu0 %v2550
    %2730 = vmatpush1.bf16.msra.mxu0 %v2547
    %2731 = vmatprep.subr.bf16.mxu0 0
    %2732 = vmatpush1.bf16.msra.mxu0 0
    %2733 = vmatprep.subr.bf16.mxu0 0
    %2734 = vmatpush1.bf16.msra.mxu0 0
    %2735 = vmatprep.subr.bf16.mxu0 0
    %2736 = vmatpush1.bf16.msra.mxu0 0
    %2737 = vmatprep.subr.bf16.mxu0 0
    %2738 = vmatpush1.bf16.msra.mxu0 0
    %2739 = vmatprep.subr.bf16.mxu0 0
    %2740 = vmatpush1.bf16.msra.mxu0 0
    %2741 = vmatprep.subr.bf16.mxu0 0
    %2742 = vmatpush1.bf16.msra.mxu0 0
    %2743 = vmatprep.subr.bf16.mxu0 0
    %2744 = vmatpush1.bf16.msra.mxu0 0
    %2745 = vmatprep.subr.bf16.mxu0 0
    %2746 = vmatpush1.bf16.msra.mxu0 0
    %2747 = vmatprep.subr.bf16.mxu0 0
    %2748 = vmatpush1.bf16.msra.mxu0 0
    %2749 = vmatprep.mubr.bf16.mxu0 0
    %2750 = vmatmul.mubr.bf16.gmra.mrb[0].mxu0 %v2534
    %v2751 = vpop.f32.mrb[0].mxu0
    %v2752 = vadd.f32 %v2711, %v2751
    %v2753 = vpop.f32.mrb[0].mxu0
    %v2754 = vadd.f32 %v2713, %v2753
    %v2755 = vpop.f32.mrb[0].mxu0
    %v2756 = vpop.f32.mrb[0].mxu0
    %2757 = vdwg.mxu0
    %2758 = vmatprep.subr.bf16.mxu0 %v1727
    %2759 = vmatpush1.bf16.msra.mxu0 %v1726
    %2760 = vmatprep.subr.bf16.mxu0 %v1745
    %2761 = vmatpush1.bf16.msra.mxu0 %v1744
    %2762 = vmatprep.subr.bf16.mxu0 %v1763
    %2763 = vmatpush1.bf16.msra.mxu0 %v1762
    %2764 = vmatprep.subr.bf16.mxu0 %v1781
    %2765 = vmatpush1.bf16.msra.mxu0 %v1780
    %2766 = vmatprep.subr.bf16.mxu0 %v1799
    %2767 = vmatpush1.bf16.msra.mxu0 %v1798
    %2768 = vmatprep.subr.bf16.mxu0 %v1817
    %2769 = vmatpush1.bf16.msra.mxu0 %v1816
    %2770 = vmatprep.subr.bf16.mxu0 %v1835
    %2771 = vmatpush1.bf16.msra.mxu0 %v1834
    %2772 = vmatprep.subr.bf16.mxu0 %v1853
    %2773 = vmatpush1.bf16.msra.mxu0 %v1852
    %2774 = vmatprep.subr.bf16.mxu0 %v1871
    %2775 = vmatpush1.bf16.msra.mxu0 %v1870
    %2776 = vmatprep.subr.bf16.mxu0 %v1889
    %2777 = vmatpush1.bf16.msra.mxu0 %v1888
    %2778 = vmatprep.subr.bf16.mxu0 %v1907
    %2779 = vmatpush1.bf16.msra.mxu0 %v1906
    %2780 = vmatprep.subr.bf16.mxu0 %v1925
    %2781 = vmatpush1.bf16.msra.mxu0 %v1924
    %2782 = vmatprep.subr.bf16.mxu0 %v1943
    %2783 = vmatpush1.bf16.msra.mxu0 %v1942
    %2784 = vmatprep.subr.bf16.mxu0 %v1961
    %2785 = vmatpush1.bf16.msra.mxu0 %v1960
    %2786 = vmatprep.subr.bf16.mxu0 %v1979
    %2787 = vmatpush1.bf16.msra.mxu0 %v1978
    %2788 = vmatprep.subr.bf16.mxu0 %v1997
    %2789 = vmatpush1.bf16.msra.mxu0 %v1996
    %2790 = vmatprep.mubr.bf16.mxu0 %v64
    %2791 = vmatmul.mubr.bf16.gmra.mrb[0].mxu0 %v63
    %v2792 = vpop.f32.mrb[0].mxu0
    %v2793 = vadd.f32 0.0, %v2792
    %v2794 = vpop.f32.mrb[0].mxu0
    %v2795 = vadd.f32 0.0, %v2794
    %v2796 = vpop.f32.mrb[0].mxu0
    %v2797 = vpop.f32.mrb[0].mxu0
    %2798 = vdwg.mxu0
    %2799 = vmatprep.subr.bf16.mxu0 %v2015
    %2800 = vmatpush1.bf16.msra.mxu0 %v2014
    %2801 = vmatprep.subr.bf16.mxu0 %v2033
    %2802 = vmatpush1.bf16.msra.mxu0 %v2032
    %2803 = vmatprep.subr.bf16.mxu0 %v2051
    %2804 = vmatpush1.bf16.msra.mxu0 %v2050
    %2805 = vmatprep.subr.bf16.mxu0 %v2069
    %2806 = vmatpush1.bf16.msra.mxu0 %v2068
    %2807 = vmatprep.subr.bf16.mxu0 %v2087
    %2808 = vmatpush1.bf16.msra.mxu0 %v2086
    %2809 = vmatprep.subr.bf16.mxu0 %v2105
    %2810 = vmatpush1.bf16.msra.mxu0 %v2104
    %2811 = vmatprep.subr.bf16.mxu0 %v2556
    %2812 = vmatpush1.bf16.msra.mxu0 %v2553
    %2813 = vmatprep.subr.bf16.mxu0 0
    %2814 = vmatpush1.bf16.msra.mxu0 0
    %2815 = vmatprep.subr.bf16.mxu0 0
    %2816 = vmatpush1.bf16.msra.mxu0 0
    %2817 = vmatprep.subr.bf16.mxu0 0
    %2818 = vmatpush1.bf16.msra.mxu0 0
    %2819 = vmatprep.subr.bf16.mxu0 0
    %2820 = vmatpush1.bf16.msra.mxu0 0
    %2821 = vmatprep.subr.bf16.mxu0 0
    %2822 = vmatpush1.bf16.msra.mxu0 0
    %2823 = vmatprep.subr.bf16.mxu0 0
    %2824 = vmatpush1.bf16.msra.mxu0 0
    %2825 = vmatprep.subr.bf16.mxu0 0
    %2826 = vmatpush1.bf16.msra.mxu0 0
    %2827 = vmatprep.subr.bf16.mxu0 0
    %2828 = vmatpush1.bf16.msra.mxu0 0
    %2829 = vmatprep.subr.bf16.mxu0 0
    %2830 = vmatpush1.bf16.msra.mxu0 0
    %2831 = vmatprep.mubr.bf16.mxu0 0
    %2832 = vmatmul.mubr.bf16.gmra.mrb[0].mxu0 %v2534
    %v2833 = vpop.f32.mrb[0].mxu0
    %v2834 = vadd.f32 %v2793, %v2833
    %v2835 = vpop.f32.mrb[0].mxu0
    %v2836 = vadd.f32 %v2795, %v2835
    %v2837 = vpop.f32.mrb[0].mxu0
    %v2838 = vpop.f32.mrb[0].mxu0
    %2839 = vdwg.mxu0
    %2840 = vmatprep.subr.bf16.mxu0 %v1729
    %2841 = vmatpush1.bf16.msra.mxu0 %v1728
    %2842 = vmatprep.subr.bf16.mxu0 %v1747
    %2843 = vmatpush1.bf16.msra.mxu0 %v1746
    %2844 = vmatprep.subr.bf16.mxu0 %v1765
    %2845 = vmatpush1.bf16.msra.mxu0 %v1764
    %2846 = vmatprep.subr.bf16.mxu0 %v1783
    %2847 = vmatpush1.bf16.msra.mxu0 %v1782
    %2848 = vmatprep.subr.bf16.mxu0 %v1801
    %2849 = vmatpush1.bf16.msra.mxu0 %v1800
    %2850 = vmatprep.subr.bf16.mxu0 %v1819
    %2851 = vmatpush1.bf16.msra.mxu0 %v1818
    %2852 = vmatprep.subr.bf16.mxu0 %v1837
    %2853 = vmatpush1.bf16.msra.mxu0 %v1836
    %2854 = vmatprep.subr.bf16.mxu0 %v1855
    %2855 = vmatpush1.bf16.msra.mxu0 %v1854
    %2856 = vmatprep.subr.bf16.mxu0 %v1873
    %2857 = vmatpush1.bf16.msra.mxu0 %v1872
    %2858 = vmatprep.subr.bf16.mxu0 %v1891
    %2859 = vmatpush1.bf16.msra.mxu0 %v1890
    %2860 = vmatprep.subr.bf16.mxu0 %v1909
    %2861 = vmatpush1.bf16.msra.mxu0 %v1908
    %2862 = vmatprep.subr.bf16.mxu0 %v1927
    %2863 = vmatpush1.bf16.msra.mxu0 %v1926
    %2864 = vmatprep.subr.bf16.mxu0 %v1945
    %2865 = vmatpush1.bf16.msra.mxu0 %v1944
    %2866 = vmatprep.subr.bf16.mxu0 %v1963
    %2867 = vmatpush1.bf16.msra.mxu0 %v1962
    %2868 = vmatprep.subr.bf16.mxu0 %v1981
    %2869 = vmatpush1.bf16.msra.mxu0 %v1980
    %2870 = vmatprep.subr.bf16.mxu0 %v1999
    %2871 = vmatpush1.bf16.msra.mxu0 %v1998
    %2872 = vmatprep.mubr.bf16.mxu0 %v64
    %2873 = vmatmul.mubr.bf16.gmra.mrb[0].mxu0 %v63
    %v2874 = vpop.f32.mrb[0].mxu0
    %v2875 = vadd.f32 0.0, %v2874
    %v2876 = vpop.f32.mrb[0].mxu0
    %v2877 = vadd.f32 0.0, %v2876
    %v2878 = vpop.f32.mrb[0].mxu0
    %v2879 = vpop.f32.mrb[0].mxu0
    %2880 = vdwg.mxu0
    %2881 = vmatprep.subr.bf16.mxu0 %v2017
    %2882 = vmatpush1.bf16.msra.mxu0 %v2016
    %2883 = vmatprep.subr.bf16.mxu0 %v2035
    %2884 = vmatpush1.bf16.msra.mxu0 %v2034
    %2885 = vmatprep.subr.bf16.mxu0 %v2053
    %2886 = vmatpush1.bf16.msra.mxu0 %v2052
    %2887 = vmatprep.subr.bf16.mxu0 %v2071
    %2888 = vmatpush1.bf16.msra.mxu0 %v2070
    %2889 = vmatprep.subr.bf16.mxu0 %v2089
    %2890 = vmatpush1.bf16.msra.mxu0 %v2088
    %2891 = vmatprep.subr.bf16.mxu0 %v2107
    %2892 = vmatpush1.bf16.msra.mxu0 %v2106
    %2893 = vmatprep.subr.bf16.mxu0 %v2562
    %2894 = vmatpush1.bf16.msra.mxu0 %v2559
    %2895 = vmatprep.subr.bf16.mxu0 0
    %2896 = vmatpush1.bf16.msra.mxu0 0
    %2897 = vmatprep.subr.bf16.mxu0 0
    %2898 = vmatpush1.bf16.msra.mxu0 0
    %2899 = vmatprep.subr.bf16.mxu0 0
    %2900 = vmatpush1.bf16.msra.mxu0 0
    %2901 = vmatprep.subr.bf16.mxu0 0
    %2902 = vmatpush1.bf16.msra.mxu0 0
    %2903 = vmatprep.subr.bf16.mxu0 0
    %2904 = vmatpush1.bf16.msra.mxu0 0
    %2905 = vmatprep.subr.bf16.mxu0 0
    %2906 = vmatpush1.bf16.msra.mxu0 0
    %2907 = vmatprep.subr.bf16.mxu0 0
    %2908 = vmatpush1.bf16.msra.mxu0 0
    %2909 = vmatprep.subr.bf16.mxu0 0
    %2910 = vmatpush1.bf16.msra.mxu0 0
    %2911 = vmatprep.subr.bf16.mxu0 0
    %2912 = vmatpush1.bf16.msra.mxu0 0
    %2913 = vmatprep.mubr.bf16.mxu0 0
    %2914 = vmatmul.mubr.bf16.gmra.mrb[0].mxu0 %v2534
    %v2915 = vpop.f32.mrb[0].mxu0
    %v2916 = vadd.f32 %v2875, %v2915
    %v2917 = vpop.f32.mrb[0].mxu0
    %v2918 = vadd.f32 %v2877, %v2917
    %v2919 = vpop.f32.mrb[0].mxu0
    %v2920 = vpop.f32.mrb[0].mxu0
    %2921 = vdwg.mxu0
    %2922 = vmatprep.subr.bf16.mxu0 %v1731
    %2923 = vmatpush1.bf16.msra.mxu0 %v1730
    %2924 = vmatprep.subr.bf16.mxu0 %v1749
    %2925 = vmatpush1.bf16.msra.mxu0 %v1748
    %2926 = vmatprep.subr.bf16.mxu0 %v1767
    %2927 = vmatpush1.bf16.msra.mxu0 %v1766
    %2928 = vmatprep.subr.bf16.mxu0 %v1785
    %2929 = vmatpush1.bf16.msra.mxu0 %v1784
    %2930 = vmatprep.subr.bf16.mxu0 %v1803
    %2931 = vmatpush1.bf16.msra.mxu0 %v1802
    %2932 = vmatprep.subr.bf16.mxu0 %v1821
    %2933 = vmatpush1.bf16.msra.mxu0 %v1820
    %2934 = vmatprep.subr.bf16.mxu0 %v1839
    %2935 = vmatpush1.bf16.msra.mxu0 %v1838
    %2936 = vmatprep.subr.bf16.mxu0 %v1857
    %2937 = vmatpush1.bf16.msra.mxu0 %v1856
    %2938 = vmatprep.subr.bf16.mxu0 %v1875
    %2939 = vmatpush1.bf16.msra.mxu0 %v1874
    %2940 = vmatprep.subr.bf16.mxu0 %v1893
    %2941 = vmatpush1.bf16.msra.mxu0 %v1892
    %2942 = vmatprep.subr.bf16.mxu0 %v1911
    %2943 = vmatpush1.bf16.msra.mxu0 %v1910
    %2944 = vmatprep.subr.bf16.mxu0 %v1929
    %2945 = vmatpush1.bf16.msra.mxu0 %v1928
    %2946 = vmatprep.subr.bf16.mxu0 %v1947
    %2947 = vmatpush1.bf16.msra.mxu0 %v1946
    %2948 = vmatprep.subr.bf16.mxu0 %v1965
    %2949 = vmatpush1.bf16.msra.mxu0 %v1964
    %2950 = vmatprep.subr.bf16.mxu0 %v1983
    %2951 = vmatpush1.bf16.msra.mxu0 %v1982
    %2952 = vmatprep.subr.bf16.mxu0 %v2001
    %2953 = vmatpush1.bf16.msra.mxu0 %v2000
    %2954 = vmatprep.mubr.bf16.mxu0 %v64
    %2955 = vmatmul.mubr.bf16.gmra.mrb[0].mxu0 %v63
    %v2956 = vpop.f32.mrb[0].mxu0
    %v2957 = vadd.f32 0.0, %v2956
    %v2958 = vpop.f32.mrb[0].mxu0
    %v2959 = vadd.f32 0.0, %v2958
    %v2960 = vpop.f32.mrb[0].mxu0
    %v2961 = vpop.f32.mrb[0].mxu0
    %2962 = vdwg.mxu0
    %2963 = vmatprep.subr.bf16.mxu0 %v2019
    %2964 = vmatpush1.bf16.msra.mxu0 %v2018
    %2965 = vmatprep.subr.bf16.mxu0 %v2037
    %2966 = vmatpush1.bf16.msra.mxu0 %v2036
    %2967 = vmatprep.subr.bf16.mxu0 %v2055
    %2968 = vmatpush1.bf16.msra.mxu0 %v2054
    %2969 = vmatprep.subr.bf16.mxu0 %v2073
    %2970 = vmatpush1.bf16.msra.mxu0 %v2072
    %2971 = vmatprep.subr.bf16.mxu0 %v2091
    %2972 = vmatpush1.bf16.msra.mxu0 %v2090
    %2973 = vmatprep.subr.bf16.mxu0 %v2109
    %2974 = vmatpush1.bf16.msra.mxu0 %v2108
    %2975 = vmatprep.subr.bf16.mxu0 %v2568
    %2976 = vmatpush1.bf16.msra.mxu0 %v2565
    %2977 = vmatprep.subr.bf16.mxu0 0
    %2978 = vmatpush1.bf16.msra.mxu0 0
    %2979 = vmatprep.subr.bf16.mxu0 0
    %2980 = vmatpush1.bf16.msra.mxu0 0
    %2981 = vmatprep.subr.bf16.mxu0 0
    %2982 = vmatpush1.bf16.msra.mxu0 0
    %2983 = vmatprep.subr.bf16.mxu0 0
    %2984 = vmatpush1.bf16.msra.mxu0 0
    %2985 = vmatprep.subr.bf16.mxu0 0
    %2986 = vmatpush1.bf16.msra.mxu0 0
    %2987 = vmatprep.subr.bf16.mxu0 0
    %2988 = vmatpush1.bf16.msra.mxu0 0
    %2989 = vmatprep.subr.bf16.mxu0 0
    %2990 = vmatpush1.bf16.msra.mxu0 0
    %2991 = vmatprep.subr.bf16.mxu0 0
    %2992 = vmatpush1.bf16.msra.mxu0 0
    %2993 = vmatprep.subr.bf16.mxu0 0
    %2994 = vmatpush1.bf16.msra.mxu0 0
    %2995 = vmatprep.mubr.bf16.mxu0 0
    %2996 = vmatmul.mubr.bf16.gmra.mrb[0].mxu0 %v2534
    %v2997 = vpop.f32.mrb[0].mxu0
    %v2998 = vadd.f32 %v2957, %v2997
    %v2999 = vpop.f32.mrb[0].mxu0
    %v3000 = vadd.f32 %v2959, %v2999
    %v3001 = vpop.f32.mrb[0].mxu0
    %v3002 = vpop.f32.mrb[0].mxu0
    %3003 = vdwg.mxu0
    %3004 = vmatprep.subr.bf16.mxu0 %v1733
    %3005 = vmatpush1.bf16.msra.mxu0 %v1732
    %3006 = vmatprep.subr.bf16.mxu0 %v1751
    %3007 = vmatpush1.bf16.msra.mxu0 %v1750
    %3008 = vmatprep.subr.bf16.mxu0 %v1769
    %3009 = vmatpush1.bf16.msra.mxu0 %v1768
    %3010 = vmatprep.subr.bf16.mxu0 %v1787
    %3011 = vmatpush1.bf16.msra.mxu0 %v1786
    %3012 = vmatprep.subr.bf16.mxu0 %v1805
    %3013 = vmatpush1.bf16.msra.mxu0 %v1804
    %3014 = vmatprep.subr.bf16.mxu0 %v1823
    %3015 = vmatpush1.bf16.msra.mxu0 %v1822
    %3016 = vmatprep.subr.bf16.mxu0 %v1841
    %3017 = vmatpush1.bf16.msra.mxu0 %v1840
    %3018 = vmatprep.subr.bf16.mxu0 %v1859
    %3019 = vmatpush1.bf16.msra.mxu0 %v1858
    %3020 = vmatprep.subr.bf16.mxu0 %v1877
    %3021 = vmatpush1.bf16.msra.mxu0 %v1876
    %3022 = vmatprep.subr.bf16.mxu0 %v1895
    %3023 = vmatpush1.bf16.msra.mxu0 %v1894
    %3024 = vmatprep.subr.bf16.mxu0 %v1913
    %3025 = vmatpush1.bf16.msra.mxu0 %v1912
    %3026 = vmatprep.subr.bf16.mxu0 %v1931
    %3027 = vmatpush1.bf16.msra.mxu0 %v1930
    %3028 = vmatprep.subr.bf16.mxu0 %v1949
    %3029 = vmatpush1.bf16.msra.mxu0 %v1948
    %3030 = vmatprep.subr.bf16.mxu0 %v1967
    %3031 = vmatpush1.bf16.msra.mxu0 %v1966
    %3032 = vmatprep.subr.bf16.mxu0 %v1985
    %3033 = vmatpush1.bf16.msra.mxu0 %v1984
    %3034 = vmatprep.subr.bf16.mxu0 %v2003
    %3035 = vmatpush1.bf16.msra.mxu0 %v2002
    %3036 = vmatprep.mubr.bf16.mxu0 %v64
    %3037 = vmatmul.mubr.bf16.gmra.mrb[0].mxu0 %v63
    %v3038 = vpop.f32.mrb[0].mxu0
    %v3039 = vadd.f32 0.0, %v3038
    %v3040 = vpop.f32.mrb[0].mxu0
    %v3041 = vadd.f32 0.0, %v3040
    %v3042 = vpop.f32.mrb[0].mxu0
    %v3043 = vpop.f32.mrb[0].mxu0
    %3044 = vdwg.mxu0
    %3045 = vmatprep.subr.bf16.mxu0 %v2021
    %3046 = vmatpush1.bf16.msra.mxu0 %v2020
    %3047 = vmatprep.subr.bf16.mxu0 %v2039
    %3048 = vmatpush1.bf16.msra.mxu0 %v2038
    %3049 = vmatprep.subr.bf16.mxu0 %v2057
    %3050 = vmatpush1.bf16.msra.mxu0 %v2056
    %3051 = vmatprep.subr.bf16.mxu0 %v2075
    %3052 = vmatpush1.bf16.msra.mxu0 %v2074
    %3053 = vmatprep.subr.bf16.mxu0 %v2093
    %3054 = vmatpush1.bf16.msra.mxu0 %v2092
    %3055 = vmatprep.subr.bf16.mxu0 %v2111
    %3056 = vmatpush1.bf16.msra.mxu0 %v2110
    %3057 = vmatprep.subr.bf16.mxu0 %v2574
    %3058 = vmatpush1.bf16.msra.mxu0 %v2571
    %3059 = vmatprep.subr.bf16.mxu0 0
    %3060 = vmatpush1.bf16.msra.mxu0 0
    %3061 = vmatprep.subr.bf16.mxu0 0
    %3062 = vmatpush1.bf16.msra.mxu0 0
    %3063 = vmatprep.subr.bf16.mxu0 0
    %3064 = vmatpush1.bf16.msra.mxu0 0
    %3065 = vmatprep.subr.bf16.mxu0 0
    %3066 = vmatpush1.bf16.msra.mxu0 0
    %3067 = vmatprep.subr.bf16.mxu0 0
    %3068 = vmatpush1.bf16.msra.mxu0 0
    %3069 = vmatprep.subr.bf16.mxu0 0
    %3070 = vmatpush1.bf16.msra.mxu0 0
    %3071 = vmatprep.subr.bf16.mxu0 0
    %3072 = vmatpush1.bf16.msra.mxu0 0
    %3073 = vmatprep.subr.bf16.mxu0 0
    %3074 = vmatpush1.bf16.msra.mxu0 0
    %3075 = vmatprep.subr.bf16.mxu0 0
    %3076 = vmatpush1.bf16.msra.mxu0 0
    %3077 = vmatprep.mubr.bf16.mxu0 0
    %3078 = vmatmul.mubr.bf16.gmra.mrb[0].mxu0 %v2534
    %v3079 = vpop.f32.mrb[0].mxu0
    %v3080 = vadd.f32 %v3039, %v3079
    %v3081 = vpop.f32.mrb[0].mxu0
    %v3082 = vadd.f32 %v3041, %v3081
    %v3083 = vpop.f32.mrb[0].mxu0
    %v3084 = vpop.f32.mrb[0].mxu0
    %3085 = vdwg.mxu0
    %3086 = vmatprep.subr.bf16.mxu0 %v1735
    %3087 = vmatpush1.bf16.msra.mxu0 %v1734
    %3088 = vmatprep.subr.bf16.mxu0 %v1753
    %3089 = vmatpush1.bf16.msra.mxu0 %v1752
    %3090 = vmatprep.subr.bf16.mxu0 %v1771
    %3091 = vmatpush1.bf16.msra.mxu0 %v1770
    %3092 = vmatprep.subr.bf16.mxu0 %v1789
    %3093 = vmatpush1.bf16.msra.mxu0 %v1788
    %3094 = vmatprep.subr.bf16.mxu0 %v1807
    %3095 = vmatpush1.bf16.msra.mxu0 %v1806
    %3096 = vmatprep.subr.bf16.mxu0 %v1825
    %3097 = vmatpush1.bf16.msra.mxu0 %v1824
    %3098 = vmatprep.subr.bf16.mxu0 %v1843
    %3099 = vmatpush1.bf16.msra.mxu0 %v1842
    %3100 = vmatprep.subr.bf16.mxu0 %v1861
    %3101 = vmatpush1.bf16.msra.mxu0 %v1860
    %3102 = vmatprep.subr.bf16.mxu0 %v1879
    %3103 = vmatpush1.bf16.msra.mxu0 %v1878
    %3104 = vmatprep.subr.bf16.mxu0 %v1897
    %3105 = vmatpush1.bf16.msra.mxu0 %v1896
    %3106 = vmatprep.subr.bf16.mxu0 %v1915
    %3107 = vmatpush1.bf16.msra.mxu0 %v1914
    %3108 = vmatprep.subr.bf16.mxu0 %v1933
    %3109 = vmatpush1.bf16.msra.mxu0 %v1932
    %3110 = vmatprep.subr.bf16.mxu0 %v1951
    %3111 = vmatpush1.bf16.msra.mxu0 %v1950
    %3112 = vmatprep.subr.bf16.mxu0 %v1969
    %3113 = vmatpush1.bf16.msra.mxu0 %v1968
    %3114 = vmatprep.subr.bf16.mxu0 %v1987
    %3115 = vmatpush1.bf16.msra.mxu0 %v1986
    %3116 = vmatprep.subr.bf16.mxu0 %v2005
    %3117 = vmatpush1.bf16.msra.mxu0 %v2004
    %3118 = vmatprep.mubr.bf16.mxu0 %v64
    %3119 = vmatmul.mubr.bf16.gmra.mrb[0].mxu0 %v63
    %v3120 = vpop.f32.mrb[0].mxu0
    %v3121 = vadd.f32 0.0, %v3120
    %v3122 = vpop.f32.mrb[0].mxu0
    %v3123 = vadd.f32 0.0, %v3122
    %v3124 = vpop.f32.mrb[0].mxu0
    %v3125 = vpop.f32.mrb[0].mxu0
    %3126 = vdwg.mxu0
    %3127 = vmatprep.subr.bf16.mxu0 %v2023
    %3128 = vmatpush1.bf16.msra.mxu0 %v2022
    %3129 = vmatprep.subr.bf16.mxu0 %v2041
    %3130 = vmatpush1.bf16.msra.mxu0 %v2040
    %3131 = vmatprep.subr.bf16.mxu0 %v2059
    %3132 = vmatpush1.bf16.msra.mxu0 %v2058
    %3133 = vmatprep.subr.bf16.mxu0 %v2077
    %3134 = vmatpush1.bf16.msra.mxu0 %v2076
    %3135 = vmatprep.subr.bf16.mxu0 %v2095
    %3136 = vmatpush1.bf16.msra.mxu0 %v2094
    %3137 = vmatprep.subr.bf16.mxu0 %v2113
    %3138 = vmatpush1.bf16.msra.mxu0 %v2112
    %3139 = vmatprep.subr.bf16.mxu0 %v2580
    %3140 = vmatpush1.bf16.msra.mxu0 %v2577
    %3141 = vmatprep.subr.bf16.mxu0 0
    %3142 = vmatpush1.bf16.msra.mxu0 0
    %3143 = vmatprep.subr.bf16.mxu0 0
    %3144 = vmatpush1.bf16.msra.mxu0 0
    %3145 = vmatprep.subr.bf16.mxu0 0
    %3146 = vmatpush1.bf16.msra.mxu0 0
    %3147 = vmatprep.subr.bf16.mxu0 0
    %3148 = vmatpush1.bf16.msra.mxu0 0
    %3149 = vmatprep.subr.bf16.mxu0 0
    %3150 = vmatpush1.bf16.msra.mxu0 0
    %3151 = vmatprep.subr.bf16.mxu0 0
    %3152 = vmatpush1.bf16.msra.mxu0 0
    %3153 = vmatprep.subr.bf16.mxu0 0
    %3154 = vmatpush1.bf16.msra.mxu0 0
    %3155 = vmatprep.subr.bf16.mxu0 0
    %3156 = vmatpush1.bf16.msra.mxu0 0
    %3157 = vmatprep.subr.bf16.mxu0 0
    %3158 = vmatpush1.bf16.msra.mxu0 0
    %3159 = vmatprep.mubr.bf16.mxu0 0
    %3160 = vmatmul.mubr.bf16.gmra.mrb[0].mxu0 %v2534
    %v3161 = vpop.f32.mrb[0].mxu0
    %v3162 = vadd.f32 %v3121, %v3161
    %v3163 = vpop.f32.mrb[0].mxu0
    %v3164 = vadd.f32 %v3123, %v3163
    %v3165 = vpop.f32.mrb[0].mxu0
    %v3166 = vpop.f32.mrb[0].mxu0
    %3167 = vdwg.mxu0
    %3168 = vmatprep.subr.bf16.mxu0 %v1737
    %3169 = vmatpush1.bf16.msra.mxu0 %v1736
    %3170 = vmatprep.subr.bf16.mxu0 %v1755
    %3171 = vmatpush1.bf16.msra.mxu0 %v1754
    %3172 = vmatprep.subr.bf16.mxu0 %v1773
    %3173 = vmatpush1.bf16.msra.mxu0 %v1772
    %3174 = vmatprep.subr.bf16.mxu0 %v1791
    %3175 = vmatpush1.bf16.msra.mxu0 %v1790
    %3176 = vmatprep.subr.bf16.mxu0 %v1809
    %3177 = vmatpush1.bf16.msra.mxu0 %v1808
    %3178 = vmatprep.subr.bf16.mxu0 %v1827
    %3179 = vmatpush1.bf16.msra.mxu0 %v1826
    %3180 = vmatprep.subr.bf16.mxu0 %v1845
    %3181 = vmatpush1.bf16.msra.mxu0 %v1844
    %3182 = vmatprep.subr.bf16.mxu0 %v1863
    %3183 = vmatpush1.bf16.msra.mxu0 %v1862
    %3184 = vmatprep.subr.bf16.mxu0 %v1881
    %3185 = vmatpush1.bf16.msra.mxu0 %v1880
    %3186 = vmatprep.subr.bf16.mxu0 %v1899
    %3187 = vmatpush1.bf16.msra.mxu0 %v1898
    %3188 = vmatprep.subr.bf16.mxu0 %v1917
    %3189 = vmatpush1.bf16.msra.mxu0 %v1916
    %3190 = vmatprep.subr.bf16.mxu0 %v1935
    %3191 = vmatpush1.bf16.msra.mxu0 %v1934
    %3192 = vmatprep.subr.bf16.mxu0 %v1953
    %3193 = vmatpush1.bf16.msra.mxu0 %v1952
    %3194 = vmatprep.subr.bf16.mxu0 %v1971
    %3195 = vmatpush1.bf16.msra.mxu0 %v1970
    %3196 = vmatprep.subr.bf16.mxu0 %v1989
    %3197 = vmatpush1.bf16.msra.mxu0 %v1988
    %3198 = vmatprep.subr.bf16.mxu0 %v2007
    %3199 = vmatpush1.bf16.msra.mxu0 %v2006
    %3200 = vmatprep.mubr.bf16.mxu0 %v64
    %3201 = vmatmul.mubr.bf16.gmra.mrb[0].mxu0 %v63
    %v3202 = vpop.f32.mrb[0].mxu0
    %v3203 = vadd.f32 0.0, %v3202
    %v3204 = vpop.f32.mrb[0].mxu0
    %v3205 = vadd.f32 0.0, %v3204
    %v3206 = vpop.f32.mrb[0].mxu0
    %v3207 = vpop.f32.mrb[0].mxu0
    %3208 = vdwg.mxu0
    %3209 = vmatprep.subr.bf16.mxu0 %v2025
    %3210 = vmatpush1.bf16.msra.mxu0 %v2024
    %3211 = vmatprep.subr.bf16.mxu0 %v2043
    %3212 = vmatpush1.bf16.msra.mxu0 %v2042
    %3213 = vmatprep.subr.bf16.mxu0 %v2061
    %3214 = vmatpush1.bf16.msra.mxu0 %v2060
    %3215 = vmatprep.subr.bf16.mxu0 %v2079
    %3216 = vmatpush1.bf16.msra.mxu0 %v2078
    %3217 = vmatprep.subr.bf16.mxu0 %v2097
    %3218 = vmatpush1.bf16.msra.mxu0 %v2096
    %3219 = vmatprep.subr.bf16.mxu0 %v2115
    %3220 = vmatpush1.bf16.msra.mxu0 %v2114
    %3221 = vmatprep.subr.bf16.mxu0 %v2586
    %3222 = vmatpush1.bf16.msra.mxu0 %v2583
    %3223 = vmatprep.subr.bf16.mxu0 0
    %3224 = vmatpush1.bf16.msra.mxu0 0
    %3225 = vmatprep.subr.bf16.mxu0 0
    %3226 = vmatpush1.bf16.msra.mxu0 0
    %3227 = vmatprep.subr.bf16.mxu0 0
    %3228 = vmatpush1.bf16.msra.mxu0 0
    %3229 = vmatprep.subr.bf16.mxu0 0
    %3230 = vmatpush1.bf16.msra.mxu0 0
    %3231 = vmatprep.subr.bf16.mxu0 0
    %3232 = vmatpush1.bf16.msra.mxu0 0
    %3233 = vmatprep.subr.bf16.mxu0 0
    %3234 = vmatpush1.bf16.msra.mxu0 0
    %3235 = vmatprep.subr.bf16.mxu0 0
    %3236 = vmatpush1.bf16.msra.mxu0 0
    %3237 = vmatprep.subr.bf16.mxu0 0
    %3238 = vmatpush1.bf16.msra.mxu0 0
    %3239 = vmatprep.subr.bf16.mxu0 0
    %3240 = vmatpush1.bf16.msra.mxu0 0
    %3241 = vmatprep.mubr.bf16.mxu0 0
    %3242 = vmatmul.mubr.bf16.gmra.mrb[0].mxu0 %v2534
    %v3243 = vpop.f32.mrb[0].mxu0
    %v3244 = vadd.f32 %v3203, %v3243
    %v3245 = vpop.f32.mrb[0].mxu0
    %v3246 = vadd.f32 %v3205, %v3245
    %v3247 = vpop.f32.mrb[0].mxu0
    %v3248 = vpop.f32.mrb[0].mxu0
    %3249 = vdwg.mxu0
    %3250 = vmatprep.subr.bf16.mxu0 %v1739
    %3251 = vmatpush1.bf16.msra.mxu0 %v1738
    %3252 = vmatprep.subr.bf16.mxu0 %v1757
    %3253 = vmatpush1.bf16.msra.mxu0 %v1756
    %3254 = vmatprep.subr.bf16.mxu0 %v1775
    %3255 = vmatpush1.bf16.msra.mxu0 %v1774
    %3256 = vmatprep.subr.bf16.mxu0 %v1793
    %3257 = vmatpush1.bf16.msra.mxu0 %v1792
    %3258 = vmatprep.subr.bf16.mxu0 %v1811
    %3259 = vmatpush1.bf16.msra.mxu0 %v1810
    %3260 = vmatprep.subr.bf16.mxu0 %v1829
    %3261 = vmatpush1.bf16.msra.mxu0 %v1828
    %3262 = vmatprep.subr.bf16.mxu0 %v1847
    %3263 = vmatpush1.bf16.msra.mxu0 %v1846
    %3264 = vmatprep.subr.bf16.mxu0 %v1865
    %3265 = vmatpush1.bf16.msra.mxu0 %v1864
    %3266 = vmatprep.subr.bf16.mxu0 %v1883
    %3267 = vmatpush1.bf16.msra.mxu0 %v1882
    %3268 = vmatprep.subr.bf16.mxu0 %v1901
    %3269 = vmatpush1.bf16.msra.mxu0 %v1900
    %3270 = vmatprep.subr.bf16.mxu0 %v1919
    %3271 = vmatpush1.bf16.msra.mxu0 %v1918
    %3272 = vmatprep.subr.bf16.mxu0 %v1937
    %3273 = vmatpush1.bf16.msra.mxu0 %v1936
    %3274 = vmatprep.subr.bf16.mxu0 %v1955
    %3275 = vmatpush1.bf16.msra.mxu0 %v1954
    %3276 = vmatprep.subr.bf16.mxu0 %v1973
    %3277 = vmatpush1.bf16.msra.mxu0 %v1972
    %3278 = vmatprep.subr.bf16.mxu0 %v1991
    %3279 = vmatpush1.bf16.msra.mxu0 %v1990
    %3280 = vmatprep.subr.bf16.mxu0 %v2009
    %3281 = vmatpush1.bf16.msra.mxu0 %v2008
    %3282 = vmatprep.mubr.bf16.mxu0 %v64
    %3283 = vmatmul.mubr.bf16.gmra.mrb[0].mxu0 %v63
    %v3284 = vpop.f32.mrb[0].mxu0
    %v3285 = vadd.f32 0.0, %v3284
    %v3286 = vpop.f32.mrb[0].mxu0
    %v3287 = vadd.f32 0.0, %v3286
    %v3288 = vpop.f32.mrb[0].mxu0
    %v3289 = vpop.f32.mrb[0].mxu0
    %3290 = vdwg.mxu0
    %3291 = vmatprep.subr.bf16.mxu0 %v2027
    %3292 = vmatpush1.bf16.msra.mxu0 %v2026
    %3293 = vmatprep.subr.bf16.mxu0 %v2045
    %3294 = vmatpush1.bf16.msra.mxu0 %v2044
    %3295 = vmatprep.subr.bf16.mxu0 %v2063
    %3296 = vmatpush1.bf16.msra.mxu0 %v2062
    %3297 = vmatprep.subr.bf16.mxu0 %v2081
    %3298 = vmatpush1.bf16.msra.mxu0 %v2080
    %3299 = vmatprep.subr.bf16.mxu0 %v2099
    %3300 = vmatpush1.bf16.msra.mxu0 %v2098
    %3301 = vmatprep.subr.bf16.mxu0 %v2117
    %3302 = vmatpush1.bf16.msra.mxu0 %v2116
    %3303 = vmatprep.subr.bf16.mxu0 %v2592
    %3304 = vmatpush1.bf16.msra.mxu0 %v2589
    %3305 = vmatprep.subr.bf16.mxu0 0
    %3306 = vmatpush1.bf16.msra.mxu0 0
    %3307 = vmatprep.subr.bf16.mxu0 0
    %3308 = vmatpush1.bf16.msra.mxu0 0
    %3309 = vmatprep.subr.bf16.mxu0 0
    %3310 = vmatpush1.bf16.msra.mxu0 0
    %3311 = vmatprep.subr.bf16.mxu0 0
    %3312 = vmatpush1.bf16.msra.mxu0 0
    %3313 = vmatprep.subr.bf16.mxu0 0
    %3314 = vmatpush1.bf16.msra.mxu0 0
    %3315 = vmatprep.subr.bf16.mxu0 0
    %3316 = vmatpush1.bf16.msra.mxu0 0
    %3317 = vmatprep.subr.bf16.mxu0 0
    %3318 = vmatpush1.bf16.msra.mxu0 0
    %3319 = vmatprep.subr.bf16.mxu0 0
    %3320 = vmatpush1.bf16.msra.mxu0 0
    %3321 = vmatprep.subr.bf16.mxu0 0
    %3322 = vmatpush1.bf16.msra.mxu0 0
    %3323 = vmatprep.mubr.bf16.mxu0 0
    %3324 = vmatmul.mubr.bf16.gmra.mrb[0].mxu0 %v2534
    %v3325 = vpop.f32.mrb[0].mxu0
    %v3326 = vadd.f32 %v3285, %v3325
    %v3327 = vpop.f32.mrb[0].mxu0
    %v3328 = vadd.f32 %v3287, %v3327
    %v3329 = vpop.f32.mrb[0].mxu0
    %v3330 = vpop.f32.mrb[0].mxu0
    %3331 = vdwg.mxu0
    %v3332 = vmax.f32 %v2670, %v2752
    %v3333 = vmax.f32 %v2672, %v2754
    %v3334 = vmax.f32 %v3332, %v2834
    %v3335 = vmax.f32 %v3333, %v2836
    %v3336 = vmax.f32 %v3334, %v2916
    %v3337 = vmax.f32 %v3335, %v2918
    %v3338 = vmax.f32 %v3336, %v2998
    %v3339 = vmax.f32 %v3337, %v3000
    %v3340 = vmax.f32 %v3338, %v3080
    %v3341 = vmax.f32 %v3339, %v3082
    %v3342 = vmax.f32 %v3340, %v3162
    %v3343 = vmax.f32 %v3341, %v3164
    %v3344 = vmax.f32 %v3342, %v3244
    %v3345 = vmax.f32 %v3343, %v3246
    %v3346 = vmax.f32 %v3344, %v3326
    %v3347 = vmax.f32 %v3345, %v3328
    %v3348 = vld [vmem:[#allocation5] sm:$0xff]
    %v3350 = vlaneseq
    %v3351 = vshrl.u32 %v3350, 7
    %v3352 = vsub.s32 0, %v3351
    %v3353 = vrot.slane %v3348, %v3352
    %v3354 = vlaneseq
    %v3355 = vshrl.u32 %v3354, 7
    %v3356 = vsub.s32 4, %v3355
    %v3357 = vrot.slane %v3348, %v3356
    %v3360 = vlaneseq
    %v3361 = vshrl.u32 %v3360, 7
    %v3362 = vsub.s32 0, %v3361
    %v3363 = vrot.slane %v3353, %v3362
    %v3364 = vlaneseq
    %v3365 = vshrl.u32 %v3364, 7
    %v3366 = vsub.s32 0, %v3365
    %v3367 = vrot.slane %v3357, %v3366
    %v3368 = vadd.f32 %v3346, %v3363
    %v3369 = vadd.f32 %v3347, %v3367
    %v3370 = vmax.f32 %v3368, 0.0
    %v3371 = vmax.f32 %v3369, 0.0
    %v3372 = vlaneseq
    %v3373 = vshrl.u32 %v3372, 7
    %v3374 = vsub.s32 1, %v3373
    %v3375 = vrot.slane %v3348, %v3374
    %v3376 = vlaneseq
    %v3377 = vshrl.u32 %v3376, 7
    %v3378 = vsub.s32 5, %v3377
    %v3379 = vrot.slane %v3348, %v3378
    %v3382 = vlaneseq
    %v3383 = vshrl.u32 %v3382, 7
    %v3384 = vsub.s32 1, %v3383
    %v3385 = vrot.slane %v3375, %v3384
    %v3386 = vlaneseq
    %v3387 = vshrl.u32 %v3386, 7
    %v3388 = vsub.s32 1, %v3387
    %v3389 = vrot.slane %v3379, %v3388
    %v3390 = vmul.f32 %v3370, %v3385
    %v3391 = vmul.f32 %v3371, %v3389
    %vm3392 = vcmask 1041408
    %v3393 = vsel %vm3392, %v3390, 0.0
    %v3394 = vsel %vm3392, %v3391, 0.0
    %v3395 = vadd.f32 %v3393, %v3394
    %3396 = vadd.xlane.f32.xlu0 %v3395
    %v3397 = vpop.xlane.xlu0 %3396
    %v3398 = vlaneseq
    %v3399 = vshrl.u32 %v3398, 7
    %v3400 = vsub.s32 2, %v3399
    %v3401 = vrot.slane %v3348, %v3400
    %v3402 = vlaneseq
    %v3403 = vshrl.u32 %v3402, 7
    %v3404 = vsub.s32 6, %v3403
    %v3405 = vrot.slane %v3348, %v3404
    %v3408 = vlaneseq
    %v3409 = vshrl.u32 %v3408, 7
    %v3410 = vsub.s32 2, %v3409
    %v3411 = vrot.slane %v3401, %v3410
    %v3412 = vlaneseq
    %v3413 = vshrl.u32 %v3412, 7
    %v3414 = vsub.s32 2, %v3413
    %v3415 = vrot.slane %v3405, %v3414
    %v3416 = vmul.f32 %v3370, %v3411
    %v3417 = vmul.f32 %v3371, %v3415
    %v3418 = vsel %vm3392, %v3416, 0.0
    %v3419 = vsel %vm3392, %v3417, 0.0
    %v3420 = vadd.f32 %v3418, %v3419
    %3421 = vadd.xlane.f32.xlu0 %v3420
    %v3422 = vpop.xlane.xlu0 %3421
    %vm3423 = vcmask 7168
    %v3424 = vsel %vm3423, %v3397, %v3422
    %v3425 = vlaneseq
    %v3426 = vshrl.u32 %v3425, 7
    %v3427 = vsub.s32 3, %v3426
    %v3428 = vrot.slane %v3348, %v3427
    %v3429 = vadd.f32 %v3424, %v3428
    %vm3430 = vcmask 9216
    %3431 = vst.msk [vmem:[#allocation7] sm:$0x3] %vm3430, %v3429
    // Predicated region
    $region22: #{net_forward.1} parent=1 // pred_check
      _
    $region23: #{net_forward.1} parent=1 // pred_check_branch
      %3433 = sbr.rel (0) target = $region25
    $region24: #{net_forward.1} parent=1 // pred_region
      %s3435 = ssub.s32 32, 32
      %3436 = vsyncadd [#allocation4], %s3435
      %s3438 = sshll.u32 [#allocation7], 4
      %s3439 = int_to_ptr.vmem [resolvable:$true] %s3438
      %3441 = dma.vmem_to_hbm [thread:$0]  %s3439, 32, %s3, [#allocation4]
    $region25: #{net_forward.1} parent=1 // pred_fallthru
      _
    // Predicated region
    $region26: #{net_forward.1} parent=1 // pred_check
      _
    $region27: #{net_forward.1} parent=1 // pred_check_branch
      %3443 = sbr.rel (0) target = $region29
    $region28: #{net_forward.1} parent=1 // pred_region
      %3444 = dma.done [#allocation4], 32
    $region29: #{net_forward.1} parent=1 // pred_fallthru
      _
    %3445 = vsyncpa [#allocation3], 1
    %3446 = vsyncpa [#allocation6], 1
    %3447 = vsyncpa [#allocation4], 1

</llo_original>
